<compile_context>
chip_gen: v7x
topology: tpu7x:2x2x1
jax: 0.10.0
libtpu: 0.0.40
codegen_flags: <defaults>
</compile_context>

<pallas_src>
import functools

import jax
import jax.numpy as jnp
from jax import lax
from jax.experimental import pallas as pl
from jax.experimental.pallas import tpu as pltpu

TEMPERATURE = 0.1
_EPS = 1e-12                 # matches torch.nn.functional.normalize default eps
_NEG = -1.0e30               # finite "-inf" for masking (avoids inf-inf -> NaN)
_LANE = 128
_FAST_EXP_MAX_INV_TEMP = 40.0  # exp(-2*inv_temp) must stay in f32 normal range


def _round_up(x, m):
    return ((x + m - 1) // m) * m


def _contrastive_kernel(img_ref, txt_ref, csum_ref, *rest, batch, inv_temp,
                        fast, padded, slab):
    if fast:
        racc_ref, dacc_ref, tn_ref = rest
        cmax_ref = None
    else:
        cmax_ref, racc_ref, dacc_ref, tn_ref = rest

    p = pl.program_id(0)          # parallel (core) axis
    j = pl.program_id(1)          # arbitrary (row-tile) axis
    tm = img_ref.shape[0]
    bp = txt_ref.shape[0]

    # ---- per-core one-time init: normalize text (slab-chunked to bound f32
    #      temporaries), zero the per-core accumulators.
    @pl.when(j == 0)
    def _init():
        def norm_slab(s, carry):
            r0 = pl.multiple_of(s * slab, slab)
            t = txt_ref[pl.ds(r0, slab), :].astype(jnp.float32)
            ss = jnp.sum(t * t, axis=1, keepdims=True)
            tn_ref[pl.ds(r0, slab), :] = (
                t * lax.rsqrt(jnp.maximum(ss, _EPS * _EPS))).astype(jnp.bfloat16)
            return carry
        lax.fori_loop(0, bp // slab, norm_slab, 0)
        csum_ref[...] = jnp.zeros_like(csum_ref)
        racc_ref[...] = jnp.zeros_like(racc_ref)
        dacc_ref[...] = jnp.zeros_like(dacc_ref)
        if not fast:
            cmax_ref[...] = jnp.full_like(cmax_ref, _NEG)

    # ---- normalize this image row tile (f32 VPU math); fold 1/temperature into
    #      the rsqrt scale so neither logits nor diag needs an extra multiply.
    v = img_ref[...].astype(jnp.float32)
    v_ss = jnp.sum(v * v, axis=1, keepdims=True)
    v_n = (v * (lax.rsqrt(jnp.maximum(v_ss, _EPS * _EPS)) * inv_temp)
           ).astype(jnp.bfloat16)

    t_n = tn_ref[...]                                           # (Bp, Dp) bf16

    # logits tile (TM, Bp): contract the feature dims of both operands (A @ B^T
    # on the MXU), bf16 operands + f32 accumulation.  Already temperature-scaled.
    logits = lax.dot_general(
        v_n, t_n,
        dimension_numbers=(((1,), (1,)), ((), ())),
        preferred_element_type=jnp.float32)

    # Diagonal (matched-pair) logits for this tile's rows.
    row_start = pl.multiple_of((p * pl.num_programs(1) + j) * tm, tm)
    t_diag = tn_ref[pl.ds(row_start, tm), :].astype(jnp.float32)
    diag = jnp.sum(v_n.astype(jnp.float32) * t_diag, axis=1, keepdims=True)

    if padded:
        col_valid = lax.broadcasted_iota(jnp.int32, (1, bp), 1) < batch
        row_valid = (lax.broadcasted_iota(jnp.int32, (tm, 1), 0) + row_start) < batch

    if fast:
        # |logits| <= inv_temp, so one exp with a static shift is numerically
        # safe: single EUP pass per tile, plain column sums (no max/rescale).
        e = jnp.exp(logits - inv_temp)
        e_rows = jnp.where(col_valid, e, 0.0) if padded else e
        row_lse = jnp.log(jnp.sum(e_rows, axis=1, keepdims=True)) + inv_temp
        e_cols = jnp.where(row_valid, e, 0.0) if padded else e
        csum_ref[...] += jnp.sum(e_cols, axis=0, keepdims=True)
    else:
        # Fallback for very small temperatures: online (max, sum) column stats.
        l_rows = jnp.where(col_valid, logits, _NEG) if padded else logits
        row_max = jnp.max(l_rows, axis=1, keepdims=True)
        row_lse = jnp.log(jnp.sum(jnp.exp(l_rows - row_max), axis=1,
                                  keepdims=True)) + row_max
        l_cols = jnp.where(row_valid, logits, _NEG) if padded else logits
        tile_cmax = jnp.max(l_cols, axis=0, keepdims=True)
        m_new = jnp.maximum(cmax_ref[...], tile_cmax)
        csum_ref[...] = (csum_ref[...] * jnp.exp(cmax_ref[...] - m_new)
                         + jnp.sum(jnp.exp(l_cols - m_new), axis=0, keepdims=True))
        cmax_ref[...] = m_new

    # ---- image -> text partial numerators for this tile.
    if padded:
        racc_ref[...] += jnp.sum(jnp.where(row_valid, row_lse - diag, 0.0),
                                 axis=0, keepdims=True)
        dacc_ref[...] += jnp.sum(jnp.where(row_valid, diag, 0.0),
                                 axis=0, keepdims=True)
    else:
        racc_ref[...] += jnp.sum(row_lse - diag, axis=0, keepdims=True)
        dacc_ref[...] += jnp.sum(diag, axis=0, keepdims=True)


def contrastive_loss(pooled_text, pooled_image, temperature=TEMPERATURE):
    """Pallas TPU implementation of ContrastiveCriterion.forward."""
    assert pooled_text.ndim == 2 and pooled_text.shape == pooled_image.shape
    b, d = pooled_text.shape
    inv_temp = 1.0 / temperature
    fast = inv_temp <= _FAST_EXP_MAX_INV_TEMP

    # ---- generation-aware tiling / VMEM budget.
    try:
        vmem_cap = int(pltpu.get_tpu_info().vmem_capacity_bytes)
    except Exception:
        vmem_cap = 64 << 20                      # conservative (v7x per-TC)
    big_vmem = vmem_cap >= (96 << 20)            # v5e / v6e (128 MiB)

    dp = _round_up(d, _LANE)
    tm_target = 512 if big_vmem else 256         # v5e/v6e: 512, v7x: 256
    bp0 = _round_up(b, 256)                      # keep MXU M/N at 256 granularity
    if bp0 >= 2 * tm_target:
        nsplit, tm = 2, tm_target                # split row tiles across 2 TCs
    elif bp0 >= 2 * 256:
        nsplit, tm = 2, 256
    else:
        nsplit, tm = 1, 256
    bp = _round_up(b, nsplit * tm)
    steps = bp // (nsplit * tm)
    slab = 256                                   # divides bp (bp % 256 == 0)
    padded = bp > b

    # bf16 inputs: halves resident text VMEM + HBM traffic.  Normalization math
    # stays f32 in-kernel; the MXU operands are bf16 either way.
    txt = jnp.pad(pooled_text.astype(jnp.bfloat16), ((0, bp - b), (0, dp - d)))
    img = jnp.pad(pooled_image.astype(jnp.bfloat16), ((0, bp - b), (0, dp - d)))

    vmem_est = (2 * bp * dp                       # normalized-text scratch (bf16)
                + 2 * bp * dp                     # text input, single buffer (bf16)
                + 2 * 2 * tm * dp                 # image tiles, double-buffered
                + 6 * tm * bp * 4                 # logits tile + exp/mask temporaries
                + 3 * slab * dp * 4               # init-normalization slab temporaries
                + 8 * bp * 4)                     # column accumulator outputs
    cap = (vmem_cap // 4) * 3                     # leave compiler headroom
    vmem_limit = int(min(max(vmem_est + (4 << 20), 32 << 20), cap))

    kernel = functools.partial(_contrastive_kernel, batch=b, inv_temp=inv_temp,
                               fast=fast, padded=padded, slab=slab)

    acc_spec = pl.BlockSpec((None, 1, bp), lambda p, j: (p, 0, 0))
    sca_spec = pl.BlockSpec((None, 1, 1), lambda p, j: (p, 0, 0))
    out_shapes = [jax.ShapeDtypeStruct((nsplit, 1, bp), jnp.float32)]   # col sum(exp)
    out_specs = [acc_spec]
    if not fast:
        out_shapes.append(jax.ShapeDtypeStruct((nsplit, 1, bp), jnp.float32))  # col max
        out_specs.append(acc_spec)
    out_shapes += [jax.ShapeDtypeStruct((nsplit, 1, 1), jnp.float32)] * 2  # racc, dacc
    out_specs += [sca_spec, sca_spec]

    cost = pl.CostEstimate(
        flops=2 * bp * bp * dp + 6 * bp * dp,
        transcendentals=(1 if fast else 2) * bp * bp + 2 * bp,
        bytes_accessed=2 * bp * dp * 2 + (2 * nsplit * bp + 4 * nsplit) * 4)

    outs = pl.pallas_call(
        kernel,
        out_shape=tuple(out_shapes),
        grid_spec=pltpu.PrefetchScalarGridSpec(
            num_scalar_prefetch=0,
            grid=(nsplit, steps),
            in_specs=[
                # image row tiles, blocked across the parallel (core) axis
                pl.BlockSpec((tm, dp), lambda p, j: (p * steps + j, 0)),
                # full text: constant index map + single buffer (fetched once)
                pl.BlockSpec((bp, dp), lambda p, j: (0, 0),
                             pipeline_mode=pl.Buffered(1)),
            ],
            out_specs=tuple(out_specs),
            scratch_shapes=[pltpu.VMEM((bp, dp), jnp.bfloat16)],  # normalized text
        ),
        compiler_params=pltpu.CompilerParams(
            dimension_semantics=("parallel", "arbitrary"),
            vmem_limit_bytes=vmem_limit),
        cost_estimate=cost,
    )(img, txt)

    # ---- tiny cross-core merge + scalar epilogue (O(B) work) in plain JAX.
    if fast:
        csum, racc, dacc = outs
        col_lse = jnp.log(jnp.sum(csum, axis=(0, 1))) + inv_temp            # (bp,)
    else:
        csum, cmax, racc, dacc = outs
        m = jnp.max(cmax, axis=(0, 1))                                       # (bp,)
        col_lse = m + jnp.log(jnp.sum(jnp.exp(cmax - m) * csum, axis=(0, 1)))
    if padded:
        col_lse = jnp.where(jnp.arange(bp) < b, col_lse, 0.0)
    loss_i = jnp.sum(racc) / b            # F.cross_entropy(logits,   arange(B))
    loss_t = (jnp.sum(col_lse) - jnp.sum(dacc)) / b  # F.cross_entropy(logits.T, .)
    return 0.5 * (loss_i + loss_t)


def _reference_loss(pooled_text, pooled_image, temperature=TEMPERATURE):
    """Pure-JAX f32 reference mirroring the PyTorch module."""
    t = pooled_text.astype(jnp.float32)
    v = pooled_image.astype(jnp.float32)
    t_n = t / jnp.maximum(jnp.linalg.norm(t, axis=1, keepdims=True), _EPS)
    v_n = v / jnp.maximum(jnp.linalg.norm(v, axis=1, keepdims=True), _EPS)
    logits = (v_n @ t_n.T) / temperature
    diag = jnp.diagonal(logits)
    lse_r = jax.scipy.special.logsumexp(logits, axis=1)
    lse_c = jax.scipy.special.logsumexp(logits, axis=0)
    return 0.5 * (jnp.mean(lse_r - diag) + jnp.mean(lse_c - diag))


if __name__ == "__main__":
    key = jax.random.PRNGKey(0)
    k_text, k_img = jax.random.split(key)
    B, D = 8, 32  # small demo shapes: batch of 8 paired embeddings, hidden 32
    pooled_text = jax.random.normal(k_text, (B, D), dtype=jnp.float32)
    pooled_image = jax.random.normal(k_img, (B, D), dtype=jnp.float32)

    loss = jax.block_until_ready(contrastive_loss(pooled_text, pooled_image))
    ref = jax.block_until_ready(_reference_loss(pooled_text, pooled_image))

    assert bool(jnp.isfinite(loss)), loss
    # bf16 inputs / MXU operands with f32 accumulation -> compare to the f32
    # reference with a tolerance covering bf16 rounding of the embeddings.
    assert jnp.allclose(loss, ref, rtol=5e-2, atol=5e-2), (loss, ref)

    print("KERNEL_OK")
</pallas_src>

<mosaic_0001>
module attributes {stable_mosaic.version = 11 : i64} {
  func.func @_contrastive_kernel(%arg0: i32, %arg1: i32, %arg2: memref<256x128xbf16, #tpu.memory_space<vmem>>, %arg3: memref<256x128xbf16, #tpu.memory_space<vmem>>, %arg4: memref<1x1x256xf32, #tpu.memory_space<vmem>>, %arg5: memref<1x1x1xf32, #tpu.memory_space<vmem>>, %arg6: memref<1x1x1xf32, #tpu.memory_space<vmem>>, %arg7: memref<256x128xbf16, #tpu.memory_space<vmem>>) attributes {dimension_semantics = [#tpu.dimension_semantics<parallel>, #tpu.dimension_semantics<arbitrary>], iteration_bounds = array<i64: 1, 1>, scalar_prefetch = 0 : i64, scratch_operands = 1 : i64, tpu.core_type = #tpu.core_type<tc>, window_params = [{transform_indices = @transform_0, window_bounds = array<i64: 256, 128>}, {pipeline_mode = #tpu.pipeline_mode<synchronous>, transform_indices = @transform_1, window_bounds = array<i64: 256, 128>}, {transform_indices = @transform_2, window_bounds = array<i64: 1, 1, 256>}, {transform_indices = @transform_3, window_bounds = array<i64: 1, 1, 1>}, {transform_indices = @transform_4, window_bounds = array<i64: 1, 1, 1>}]} {
    %c0_i32 = arith.constant 0 : i32
    %0 = arith.cmpi eq, %arg1, %c0_i32 : i32
    %1 = arith.extui %0 : i1 to i32
    %c0_i32_0 = arith.constant 0 : i32
    %2 = arith.cmpi ne, %1, %c0_i32_0 : i32
    scf.if %2 {
      %c0_i32_38 = arith.constant 0 : i32
      %c256_i32_39 = arith.constant 256 : i32
      %82 = arith.muli %c0_i32_38, %c256_i32_39 : i32
      %83 = tpu.assume_multiple %82, 256 : i32
      %84 = arith.index_cast %83 : i32 to index
      %c0_40 = arith.constant 0 : index
      %85 = vector.load %arg3[%84, %c0_40] : memref<256x128xbf16, #tpu.memory_space<vmem>>, vector<256x128xbf16>
      %86 = arith.extf %85 : vector<256x128xbf16> to vector<256x128xf32>
      %87 = arith.mulf %86, %86 : vector<256x128xf32>
      %cst_41 = arith.constant dense<0.000000e+00> : vector<256xf32>
      %88 = vector.multi_reduction <add>, %87, %cst_41 [1] : vector<256x128xf32> to vector<256xf32>
      %89 = vector.shape_cast %88 : vector<256xf32> to vector<256x1xf32>
      %cst_42 = arith.constant 1.000000e-24 : f32
      %90 = vector.broadcast %cst_42 : f32 to vector<256x1xf32>
      %91 = arith.maximumf %89, %90 : vector<256x1xf32>
      %92 = math.rsqrt %91 : vector<256x1xf32>
      %93 = vector.broadcast %92 : vector<256x1xf32> to vector<256x128xf32>
      %94 = arith.mulf %86, %93 : vector<256x128xf32>
      %95 = arith.truncf %94 : vector<256x128xf32> to vector<256x128xbf16>
      %96 = arith.index_cast %83 : i32 to index
      %c0_43 = arith.constant 0 : index
      %97 = vector.load %arg7[%96, %c0_43] : memref<256x128xbf16, #tpu.memory_space<vmem>>, vector<256x128xbf16>
      tpu.vector_store %arg7[%96, %c0_43], %95 {strides = array<i32>} : memref<256x128xbf16, #tpu.memory_space<vmem>>, vector<256x128xbf16>,
      %c1_i32_44 = arith.constant 1 : i32
      %cst_45 = arith.constant 0.000000e+00 : f32
      %98 = vector.broadcast %cst_45 : f32 to vector<1x256xf32>
      %c0_46 = arith.constant 0 : index
      %c0_47 = arith.constant 0 : index
      %c0_48 = arith.constant 0 : index
      %99 = vector.load %arg4[%c0_46, %c0_47, %c0_48] : memref<1x1x256xf32, #tpu.memory_space<vmem>>, vector<1x1x256xf32>
      %100 = vector.shape_cast %99 : vector<1x1x256xf32> to vector<1x256xf32>
      %101 = vector.shape_cast %98 : vector<1x256xf32> to vector<1x1x256xf32>
      tpu.vector_store %arg4[%c0_46, %c0_47, %c0_48], %101 {strides = array<i32>} : memref<1x1x256xf32, #tpu.memory_space<vmem>>, vector<1x1x256xf32>,
      %cst_49 = arith.constant 0.000000e+00 : f32
      %102 = vector.broadcast %cst_49 : f32 to vector<1x1xf32>
      %c0_50 = arith.constant 0 : index
      %c0_51 = arith.constant 0 : index
      %c0_52 = arith.constant 0 : index
      %103 = vector.load %arg5[%c0_50, %c0_51, %c0_52] : memref<1x1x1xf32, #tpu.memory_space<vmem>>, vector<1x1x1xf32>
      %104 = vector.shape_cast %103 : vector<1x1x1xf32> to vector<1x1xf32>
      %105 = vector.shape_cast %102 : vector<1x1xf32> to vector<1x1x1xf32>
      tpu.vector_store %arg5[%c0_50, %c0_51, %c0_52], %105 {strides = array<i32>} : memref<1x1x1xf32, #tpu.memory_space<vmem>>, vector<1x1x1xf32>,
      %cst_53 = arith.constant 0.000000e+00 : f32
      %106 = vector.broadcast %cst_53 : f32 to vector<1x1xf32>
      %c0_54 = arith.constant 0 : index
      %c0_55 = arith.constant 0 : index
      %c0_56 = arith.constant 0 : index
      %107 = vector.load %arg6[%c0_54, %c0_55, %c0_56] : memref<1x1x1xf32, #tpu.memory_space<vmem>>, vector<1x1x1xf32>
      %108 = vector.shape_cast %107 : vector<1x1x1xf32> to vector<1x1xf32>
      %109 = vector.shape_cast %106 : vector<1x1xf32> to vector<1x1x1xf32>
      tpu.vector_store %arg6[%c0_54, %c0_55, %c0_56], %109 {strides = array<i32>} : memref<1x1x1xf32, #tpu.memory_space<vmem>>, vector<1x1x1xf32>,
    } else {
    }
    %c0 = arith.constant 0 : index
    %c0_1 = arith.constant 0 : index
    %3 = vector.load %arg2[%c0, %c0_1] : memref<256x128xbf16, #tpu.memory_space<vmem>>, vector<256x128xbf16>
    %4 = arith.extf %3 : vector<256x128xbf16> to vector<256x128xf32>
    %5 = arith.mulf %4, %4 : vector<256x128xf32>
    %cst = arith.constant dense<0.000000e+00> : vector<256xf32>
    %6 = vector.multi_reduction <add>, %5, %cst [1] : vector<256x128xf32> to vector<256xf32>
    %7 = vector.shape_cast %6 : vector<256xf32> to vector<256x1xf32>
    %cst_2 = arith.constant 1.000000e-24 : f32
    %8 = vector.broadcast %cst_2 : f32 to vector<256x1xf32>
    %9 = arith.maximumf %7, %8 : vector<256x1xf32>
    %10 = math.rsqrt %9 : vector<256x1xf32>
    %cst_3 = arith.constant 1.000000e+01 : f32
    %11 = vector.broadcast %cst_3 : f32 to vector<256x1xf32>
    %12 = arith.mulf %10, %11 : vector<256x1xf32>
    %13 = vector.broadcast %12 : vector<256x1xf32> to vector<256x128xf32>
    %14 = arith.mulf %4, %13 : vector<256x128xf32>
    %15 = arith.truncf %14 : vector<256x128xf32> to vector<256x128xbf16>
    %c0_4 = arith.constant 0 : index
    %c0_5 = arith.constant 0 : index
    %16 = vector.load %arg7[%c0_4, %c0_5] : memref<256x128xbf16, #tpu.memory_space<vmem>>, vector<256x128xbf16>
    %cst_6 = arith.constant dense<0.000000e+00> : vector<256x256xf32>
    %17 = tpu.matmul %15, %16, %cst_6 {dimension_numbers = #tpu.dot_dimension_numbers<[1], [1], [0], [0], [0, 0, 1, 0], [], []>} : vector<256x128xbf16>, vector<256x128xbf16>, vector<256x256xf32> -> vector<256x256xf32>
    %c1_i32 = arith.constant 1 : i32
    %18 = arith.muli %arg0, %c1_i32 : i32
    %19 = arith.addi %18, %arg1 : i32
    %c256_i32 = arith.constant 256 : i32
    %20 = arith.muli %19, %c256_i32 : i32
    %21 = tpu.assume_multiple %20, 256 : i32
    %22 = arith.index_cast %21 : i32 to index
    %c0_7 = arith.constant 0 : index
    %23 = vector.load %arg7[%22, %c0_7] : memref<256x128xbf16, #tpu.memory_space<vmem>>, vector<256x128xbf16>
    %24 = arith.extf %23 : vector<256x128xbf16> to vector<256x128xf32>
    %25 = arith.extf %15 : vector<256x128xbf16> to vector<256x128xf32>
    %26 = arith.mulf %25, %24 : vector<256x128xf32>
    %cst_8 = arith.constant dense<0.000000e+00> : vector<256xf32>
    %27 = vector.multi_reduction <add>, %26, %cst_8 [1] : vector<256x128xf32> to vector<256xf32>
    %28 = vector.shape_cast %27 : vector<256xf32> to vector<256x1xf32>
    %29 = tpu.iota {dimensions = array<i32: 1>} : vector<1x256xi32>
    %c8_i32 = arith.constant 8 : i32
    %30 = vector.broadcast %c8_i32 : i32 to vector<1x256xi32>
    %31 = arith.cmpi slt, %29, %30 : vector<1x256xi32>
    %32 = tpu.iota {dimensions = array<i32: 0>} : vector<256x1xi32>
    %33 = vector.broadcast %21 : i32 to vector<256x1xi32>
    %34 = arith.addi %32, %33 : vector<256x1xi32>
    %c8_i32_9 = arith.constant 8 : i32
    %35 = vector.broadcast %c8_i32_9 : i32 to vector<256x1xi32>
    %36 = arith.cmpi slt, %34, %35 : vector<256x1xi32>
    %cst_10 = arith.constant 1.000000e+01 : f32
    %37 = vector.broadcast %cst_10 : f32 to vector<256x256xf32>
    %38 = arith.subf %17, %37 : vector<256x256xf32>
    %39 = math.exp %38 : vector<256x256xf32>
    %cst_11 = arith.constant 0.000000e+00 : f32
    %40 = vector.shape_cast %31 : vector<1x256xi1> to vector<1x256xi1>
    %41 = vector.broadcast %40 : vector<1x256xi1> to vector<256x256xi1>
    %42 = vector.broadcast %cst_11 : f32 to vector<256x256xf32>
    %43 = arith.select %41, %39, %42 : vector<256x256xi1>, vector<256x256xf32>
    %cst_12 = arith.constant dense<0.000000e+00> : vector<256xf32>
    %44 = vector.multi_reduction <add>, %43, %cst_12 [1] : vector<256x256xf32> to vector<256xf32>
    %45 = vector.shape_cast %44 : vector<256xf32> to vector<256x1xf32>
    %46 = math.log %45 : vector<256x1xf32>
    %cst_13 = arith.constant 1.000000e+01 : f32
    %47 = vector.broadcast %cst_13 : f32 to vector<256x1xf32>
    %48 = arith.addf %46, %47 : vector<256x1xf32>
    %cst_14 = arith.constant 0.000000e+00 : f32
    %49 = vector.shape_cast %36 : vector<256x1xi1> to vector<256x1xi1>
    %50 = vector.broadcast %49 : vector<256x1xi1> to vector<256x256xi1>
    %51 = vector.broadcast %cst_14 : f32 to vector<256x256xf32>
    %52 = arith.select %50, %39, %51 : vector<256x256xi1>, vector<256x256xf32>
    %c0_15 = arith.constant 0 : index
    %c0_16 = arith.constant 0 : index
    %c0_17 = arith.constant 0 : index
    %53 = vector.load %arg4[%c0_15, %c0_16, %c0_17] : memref<1x1x256xf32, #tpu.memory_space<vmem>>, vector<1x1x256xf32>
    %54 = vector.shape_cast %53 : vector<1x1x256xf32> to vector<1x256xf32>
    %cst_18 = arith.constant dense<0.000000e+00> : vector<256xf32>
    %55 = vector.multi_reduction <add>, %52, %cst_18 [0] : vector<256x256xf32> to vector<256xf32>
    %56 = vector.shape_cast %55 : vector<256xf32> to vector<1x256xf32>
    %57 = arith.addf %54, %56 : vector<1x256xf32>
    %c0_19 = arith.constant 0 : index
    %c0_20 = arith.constant 0 : index
    %c0_21 = arith.constant 0 : index
    %58 = vector.load %arg4[%c0_19, %c0_20, %c0_21] : memref<1x1x256xf32, #tpu.memory_space<vmem>>, vector<1x1x256xf32>
    %59 = vector.shape_cast %58 : vector<1x1x256xf32> to vector<1x256xf32>
    %60 = vector.shape_cast %57 : vector<1x256xf32> to vector<1x1x256xf32>
    tpu.vector_store %arg4[%c0_19, %c0_20, %c0_21], %60 {strides = array<i32>} : memref<1x1x256xf32, #tpu.memory_space<vmem>>, vector<1x1x256xf32>,
    %c0_22 = arith.constant 0 : index
    %c0_23 = arith.constant 0 : index
    %c0_24 = arith.constant 0 : index
    %61 = vector.load %arg5[%c0_22, %c0_23, %c0_24] : memref<1x1x1xf32, #tpu.memory_space<vmem>>, vector<1x1x1xf32>
    %62 = vector.shape_cast %61 : vector<1x1x1xf32> to vector<1x1xf32>
    %63 = arith.subf %48, %28 : vector<256x1xf32>
    %cst_25 = arith.constant 0.000000e+00 : f32
    %64 = vector.broadcast %cst_25 : f32 to vector<256x1xf32>
    %65 = arith.select %36, %63, %64 : vector<256x1xi1>, vector<256x1xf32>
    %cst_26 = arith.constant dense<0.000000e+00> : vector<1xf32>
    %66 = vector.multi_reduction <add>, %65, %cst_26 [0] : vector<256x1xf32> to vector<1xf32>
    %67 = vector.shape_cast %66 : vector<1xf32> to vector<1x1xf32>
    %68 = arith.addf %62, %67 : vector<1x1xf32>
    %c0_27 = arith.constant 0 : index
    %c0_28 = arith.constant 0 : index
    %c0_29 = arith.constant 0 : index
    %69 = vector.load %arg5[%c0_27, %c0_28, %c0_29] : memref<1x1x1xf32, #tpu.memory_space<vmem>>, vector<1x1x1xf32>
    %70 = vector.shape_cast %69 : vector<1x1x1xf32> to vector<1x1xf32>
    %71 = vector.shape_cast %68 : vector<1x1xf32> to vector<1x1x1xf32>
    tpu.vector_store %arg5[%c0_27, %c0_28, %c0_29], %71 {strides = array<i32>} : memref<1x1x1xf32, #tpu.memory_space<vmem>>, vector<1x1x1xf32>,
    %c0_30 = arith.constant 0 : index
    %c0_31 = arith.constant 0 : index
    %c0_32 = arith.constant 0 : index
    %72 = vector.load %arg6[%c0_30, %c0_31, %c0_32] : memref<1x1x1xf32, #tpu.memory_space<vmem>>, vector<1x1x1xf32>
    %73 = vector.shape_cast %72 : vector<1x1x1xf32> to vector<1x1xf32>
    %cst_33 = arith.constant 0.000000e+00 : f32
    %74 = vector.broadcast %cst_33 : f32 to vector<256x1xf32>
    %75 = arith.select %36, %28, %74 : vector<256x1xi1>, vector<256x1xf32>
    %cst_34 = arith.constant dense<0.000000e+00> : vector<1xf32>
    %76 = vector.multi_reduction <add>, %75, %cst_34 [0] : vector<256x1xf32> to vector<1xf32>
    %77 = vector.shape_cast %76 : vector<1xf32> to vector<1x1xf32>
    %78 = arith.addf %73, %77 : vector<1x1xf32>
    %c0_35 = arith.constant 0 : index
    %c0_36 = arith.constant 0 : index
    %c0_37 = arith.constant 0 : index
    %79 = vector.load %arg6[%c0_35, %c0_36, %c0_37] : memref<1x1x1xf32, #tpu.memory_space<vmem>>, vector<1x1x1xf32>
    %80 = vector.shape_cast %79 : vector<1x1x1xf32> to vector<1x1xf32>
    %81 = vector.shape_cast %78 : vector<1x1xf32> to vector<1x1x1xf32>
    tpu.vector_store %arg6[%c0_35, %c0_36, %c0_37], %81 {strides = array<i32>} : memref<1x1x1xf32, #tpu.memory_space<vmem>>, vector<1x1x1xf32>,
    return
  }
  func.func @transform_0(%arg0: i32, %arg1: i32) -> (i32, i32) {
    %c1_i32 = arith.constant 1 : i32
    %0 = arith.muli %arg0, %c1_i32 : i32
    %1 = arith.addi %0, %arg1 : i32
    %c0_i32 = arith.constant 0 : i32
    %c0_i32_0 = arith.constant 0 : i32
    return %1, %c0_i32 : i32, i32
  }
  func.func @transform_1(%arg0: i32, %arg1: i32) -> (i32, i32) {
    %c0_i32 = arith.constant 0 : i32
    %c0_i32_0 = arith.constant 0 : i32
    %c0_i32_1 = arith.constant 0 : i32
    return %c0_i32, %c0_i32_0 : i32, i32
  }
  func.func @transform_2(%arg0: i32, %arg1: i32) -> (i32, i32, i32) {
    %c0_i32 = arith.constant 0 : i32
    %c0_i32_0 = arith.constant 0 : i32
    %c0_i32_1 = arith.constant 0 : i32
    return %arg0, %c0_i32, %c0_i32_0 : i32, i32, i32
  }
  func.func @transform_3(%arg0: i32, %arg1: i32) -> (i32, i32, i32) {
    %c0_i32 = arith.constant 0 : i32
    %c0_i32_0 = arith.constant 0 : i32
    %c0_i32_1 = arith.constant 0 : i32
    return %arg0, %c0_i32, %c0_i32_0 : i32, i32, i32
  }
  func.func @transform_4(%arg0: i32, %arg1: i32) -> (i32, i32, i32) {
    %c0_i32 = arith.constant 0 : i32
    %c0_i32_0 = arith.constant 0 : i32
    %c0_i32_1 = arith.constant 0 : i32
    return %arg0, %c0_i32, %c0_i32_0 : i32, i32, i32
  }
}

</mosaic_0001>

<llo_original>
// kernel: tpu_custom_call.1
$region0: #{tpu_custom_call.1}
  #allocation0 [shape = 'u32[]', space=smem, size = 0x4, offset = 0x4, fixed_abs, tag = 'smem constant byte address 0x4 - core index']
  #allocation1 [shape = 'u32[144,128]{1,0:T(1,128)}', space=vmem, size = 0x12000, scoped, tag = 'internal scratch']
  #allocation2 [shape = 'bf16[256,128]{1,0:T(16,128)(2,1)}', space=vmem, size = 0x10000, scoped, tag = 'scratch operand']
  %s0 = inlined_call_operand.hbm [shape: bf16[256,128], index: 0, kind: input, shape index: {}]
  %s1 = inlined_call_operand.hbm [shape: bf16[256,128], index: 1, kind: input, shape index: {}]
  %s2 = inlined_call_operand.hbm [shape: f32[1,1,256], index: 2, kind: output, shape index: {0}]
  %s3 = inlined_call_operand.hbm [shape: f32[1,1,1], index: 3, kind: output, shape index: {1}]
  %s4 = inlined_call_operand.hbm [shape: f32[1,1,1], index: 4, kind: output, shape index: {2}]
  %5 = xla_tuple %s2, %s3, %s4
  %s6 = sld [smem:[#allocation0]]
  $region46: #{tpu_custom_call.1} parent=0
    _
  %s8 = ssub.s32 1, %s6
  %s9 = scalar_select 0, %s8, %s6
  $region1: #{tpu_custom_call.1} parent=0
    #allocation3 [shape = 'u8[65536]{0}', space=vmem, size = 0x10000, scoped, tag = 'input window, operand 0, single buffered']
    #allocation4 [shape = 's32[1]{0}', space=sflag, size = 0x4, scoped, tag = 'scoped memory for tpu_custom_call.1']
    #allocation5 [shape = 's32[1]{0}', space=sflag, size = 0x4, scoped, tag = 'scoped memory for tpu_custom_call.1']
    #allocation6 [shape = 'u8[65536]{0}', space=vmem, size = 0x10000, scoped, tag = 'input window, operand 1, single buffered']
    #allocation7 [shape = 's32[1]{0}', space=sflag, size = 0x4, scoped, tag = 'scoped memory for tpu_custom_call.1']
    #allocation8 [shape = 'u8[1024]{0}', space=vmem, size = 0x400, scoped, tag = 'output window, operand 0, single buffered']
    #allocation9 [shape = 'u8[512]{0}', space=vmem, size = 0x400, scoped, tag = 'output window, operand 1, single buffered']
    #allocation10 [shape = 's32[1]{0}', space=sflag, size = 0x4, scoped, tag = 'scoped memory for tpu_custom_call.1']
    #allocation11 [shape = 'u8[512]{0}', space=vmem, size = 0x400, scoped, tag = 'output window, operand 2, single buffered']
    %10 = vsyncpa [#allocation4], 0
    %11 = vsyncpa [#allocation7], 0
    %12 = vsyncpa [#allocation5], 0
    %13 = vsyncpa [#allocation10], 0
    // Predicated region
    $region2: #{tpu_custom_call.1} parent=1 // pred_check
      _
    $region3: #{tpu_custom_call.1} parent=1 // pred_check_branch
      %15 = sbr.rel (0) target = $region5
    $region4: #{tpu_custom_call.1} parent=1 // pred_region
      %s16 = sadd.s32 0, 0
      %s17 = smul.u32 32, %s16
      %s19 = ssub.s32 2048, 2048
      %20 = vsyncadd [#allocation4], %s19
      %s21 = smul.addr %s17, 64
      %s22 = scalar_lea.hbm %s0, %s21
      %s23 = sshll.u32 [#allocation3], 4
      %s24 = int_to_ptr.vmem [resolvable:$true] %s23
      %29 = dma.hbm_to_vmem [thread:$0]  %s22, 2048, %s24, [#allocation4], 64, 64, 4
    $region5: #{tpu_custom_call.1} parent=1 // pred_fallthru
      _
    // Predicated region
    $region6: #{tpu_custom_call.1} parent=1 // pred_check
      _
    $region7: #{tpu_custom_call.1} parent=1 // pred_check_branch
      %31 = sbr.rel (0) target = $region9
    $region8: #{tpu_custom_call.1} parent=1 // pred_region
      %s33 = ssub.s32 2048, 2048
      %34 = vsyncadd [#allocation7], %s33
      %s35 = sshll.u32 [#allocation6], 4
      %s36 = int_to_ptr.vmem [resolvable:$true] %s35
      %41 = dma.hbm_to_vmem [thread:$0]  %s1, 2048, %s36, [#allocation7], 64, 64, 4
    $region9: #{tpu_custom_call.1} parent=1 // pred_fallthru
      _
    // Predicated region
    $region10: #{tpu_custom_call.1} parent=1 // pred_check
      _
    $region11: #{tpu_custom_call.1} parent=1 // pred_check_branch
      %43 = sbr.rel (0) target = $region13
    $region12: #{tpu_custom_call.1} parent=1 // pred_region
      %44 = dma.done [#allocation4], 2048
    $region13: #{tpu_custom_call.1} parent=1 // pred_fallthru
      _
    // Predicated region
    $region14: #{tpu_custom_call.1} parent=1 // pred_check
      _
    $region15: #{tpu_custom_call.1} parent=1 // pred_check_branch
      %46 = sbr.rel (0) target = $region17
    $region16: #{tpu_custom_call.1} parent=1 // pred_region
      %47 = dma.done [#allocation7], 2048
    $region17: #{tpu_custom_call.1} parent=1 // pred_fallthru
      _
    %s48 = sadd.s32 0, 0
    %s49 = smul.u32 32, %s48
    %p51 = scmp.eq.s32.totalorder 0, 0
    // Predicated region
    $region18: #{tpu_custom_call.1} parent=1 // pred_check
      %p52 = pneg %p51
    $region19: #{tpu_custom_call.1} parent=1 // pred_check_branch
      %54 = sbr.rel (%p52) target = $region21
    $region20: #{tpu_custom_call.1} parent=1 // pred_region
      %v55 = vld [vmem:[#allocation6] sm:$0xf]
      %v56 = vld [vmem:[#allocation6 + $0x4] sm:$0xf]
      %v57 = vld [vmem:[#allocation6 + $0x8] sm:$0xf]
      %v58 = vld [vmem:[#allocation6 + $0xc] sm:$0xf]
      %v59 = vld [vmem:[#allocation6 + $0x10] sm:$0xf]
      %v60 = vld [vmem:[#allocation6 + $0x14] sm:$0xf]
      %v61 = vld [vmem:[#allocation6 + $0x18] sm:$0xf]
      %v62 = vld [vmem:[#allocation6 + $0x1c] sm:$0xf]
      %v63 = vld [vmem:[#allocation6 + $0x20] sm:$0xf]
      %v64 = vld [vmem:[#allocation6 + $0x24] sm:$0xf]
      %v65 = vld [vmem:[#allocation6 + $0x28] sm:$0xf]
      %v66 = vld [vmem:[#allocation6 + $0x2c] sm:$0xf]
      %v67 = vld [vmem:[#allocation6 + $0x30] sm:$0xf]
      %v68 = vld [vmem:[#allocation6 + $0x34] sm:$0xf]
      %v69 = vld [vmem:[#allocation6 + $0x38] sm:$0xf]
      %v70 = vld [vmem:[#allocation6 + $0x3c] sm:$0xf]
      %v71 = vld [vmem:[#allocation6 + $0x40] sm:$0xf]
      %v72 = vld [vmem:[#allocation6 + $0x44] sm:$0xf]
      %v73 = vld [vmem:[#allocation6 + $0x48] sm:$0xf]
      %v74 = vld [vmem:[#allocation6 + $0x4c] sm:$0xf]
      %v75 = vld [vmem:[#allocation6 + $0x50] sm:$0xf]
      %v76 = vld [vmem:[#allocation6 + $0x54] sm:$0xf]
      %v77 = vld [vmem:[#allocation6 + $0x58] sm:$0xf]
      %v78 = vld [vmem:[#allocation6 + $0x5c] sm:$0xf]
      %v79 = vld [vmem:[#allocation6 + $0x60] sm:$0xf]
      %v80 = vld [vmem:[#allocation6 + $0x64] sm:$0xf]
      %v81 = vld [vmem:[#allocation6 + $0x68] sm:$0xf]
      %v82 = vld [vmem:[#allocation6 + $0x6c] sm:$0xf]
      %v83 = vld [vmem:[#allocation6 + $0x70] sm:$0xf]
      %v84 = vld [vmem:[#allocation6 + $0x74] sm:$0xf]
      %v85 = vld [vmem:[#allocation6 + $0x78] sm:$0xf]
      %v86 = vld [vmem:[#allocation6 + $0x7c] sm:$0xf]
      %v87 = vunpack.c.l.bf16 %v55
      %v88 = vunpack.c.l.bf16 %v56
      %v89 = vunpack.c.l.bf16 %v57
      %v90 = vunpack.c.l.bf16 %v58
      %v91 = vunpack.c.l.bf16 %v59
      %v92 = vunpack.c.l.bf16 %v60
      %v93 = vunpack.c.l.bf16 %v61
      %v94 = vunpack.c.l.bf16 %v62
      %v95 = vunpack.c.l.bf16 %v63
      %v96 = vunpack.c.l.bf16 %v64
      %v97 = vunpack.c.l.bf16 %v65
      %v98 = vunpack.c.l.bf16 %v66
      %v99 = vunpack.c.l.bf16 %v67
      %v100 = vunpack.c.l.bf16 %v68
      %v101 = vunpack.c.l.bf16 %v69
      %v102 = vunpack.c.l.bf16 %v70
      %v103 = vunpack.c.l.bf16 %v71
      %v104 = vunpack.c.l.bf16 %v72
      %v105 = vunpack.c.l.bf16 %v73
      %v106 = vunpack.c.l.bf16 %v74
      %v107 = vunpack.c.l.bf16 %v75
      %v108 = vunpack.c.l.bf16 %v76
      %v109 = vunpack.c.l.bf16 %v77
      %v110 = vunpack.c.l.bf16 %v78
      %v111 = vunpack.c.l.bf16 %v79
      %v112 = vunpack.c.l.bf16 %v80
      %v113 = vunpack.c.l.bf16 %v81
      %v114 = vunpack.c.l.bf16 %v82
      %v115 = vunpack.c.l.bf16 %v83
      %v116 = vunpack.c.l.bf16 %v84
      %v117 = vunpack.c.l.bf16 %v85
      %v118 = vunpack.c.l.bf16 %v86
      %v119 = vmul.f32 %v87, %v87
      %v120 = vmul.f32 %v88, %v88
      %v121 = vmul.f32 %v89, %v89
      %v122 = vmul.f32 %v90, %v90
      %v123 = vmul.f32 %v91, %v91
      %v124 = vmul.f32 %v92, %v92
      %v125 = vmul.f32 %v93, %v93
      %v126 = vmul.f32 %v94, %v94
      %v127 = vmul.f32 %v95, %v95
      %v128 = vmul.f32 %v96, %v96
      %v129 = vmul.f32 %v97, %v97
      %v130 = vmul.f32 %v98, %v98
      %v131 = vmul.f32 %v99, %v99
      %v132 = vmul.f32 %v100, %v100
      %v133 = vmul.f32 %v101, %v101
      %v134 = vmul.f32 %v102, %v102
      %v135 = vmul.f32 %v103, %v103
      %v136 = vmul.f32 %v104, %v104
      %v137 = vmul.f32 %v105, %v105
      %v138 = vmul.f32 %v106, %v106
      %v139 = vmul.f32 %v107, %v107
      %v140 = vmul.f32 %v108, %v108
      %v141 = vmul.f32 %v109, %v109
      %v142 = vmul.f32 %v110, %v110
      %v143 = vmul.f32 %v111, %v111
      %v144 = vmul.f32 %v112, %v112
      %v145 = vmul.f32 %v113, %v113
      %v146 = vmul.f32 %v114, %v114
      %v147 = vmul.f32 %v115, %v115
      %v148 = vmul.f32 %v116, %v116
      %v149 = vmul.f32 %v117, %v117
      %v150 = vmul.f32 %v118, %v118
      %151 = vadd.xlane.f32.xlu0 %v119
      %v152 = vpop.xlane.xlu0 %151
      %153 = vadd.xlane.f32.xlu0 %v120
      %v154 = vpop.xlane.xlu0 %153
      %155 = vadd.xlane.f32.xlu0 %v121
      %v156 = vpop.xlane.xlu0 %155
      %157 = vadd.xlane.f32.xlu0 %v122
      %v158 = vpop.xlane.xlu0 %157
      %159 = vadd.xlane.f32.xlu0 %v123
      %v160 = vpop.xlane.xlu0 %159
      %161 = vadd.xlane.f32.xlu0 %v124
      %v162 = vpop.xlane.xlu0 %161
      %163 = vadd.xlane.f32.xlu0 %v125
      %v164 = vpop.xlane.xlu0 %163
      %165 = vadd.xlane.f32.xlu0 %v126
      %v166 = vpop.xlane.xlu0 %165
      %167 = vadd.xlane.f32.xlu0 %v127
      %v168 = vpop.xlane.xlu0 %167
      %169 = vadd.xlane.f32.xlu0 %v128
      %v170 = vpop.xlane.xlu0 %169
      %171 = vadd.xlane.f32.xlu0 %v129
      %v172 = vpop.xlane.xlu0 %171
      %173 = vadd.xlane.f32.xlu0 %v130
      %v174 = vpop.xlane.xlu0 %173
      %175 = vadd.xlane.f32.xlu0 %v131
      %v176 = vpop.xlane.xlu0 %175
      %177 = vadd.xlane.f32.xlu0 %v132
      %v178 = vpop.xlane.xlu0 %177
      %179 = vadd.xlane.f32.xlu0 %v133
      %v180 = vpop.xlane.xlu0 %179
      %181 = vadd.xlane.f32.xlu0 %v134
      %v182 = vpop.xlane.xlu0 %181
      %183 = vadd.xlane.f32.xlu0 %v135
      %v184 = vpop.xlane.xlu0 %183
      %185 = vadd.xlane.f32.xlu0 %v136
      %v186 = vpop.xlane.xlu0 %185
      %187 = vadd.xlane.f32.xlu0 %v137
      %v188 = vpop.xlane.xlu0 %187
      %189 = vadd.xlane.f32.xlu0 %v138
      %v190 = vpop.xlane.xlu0 %189
      %191 = vadd.xlane.f32.xlu0 %v139
      %v192 = vpop.xlane.xlu0 %191
      %193 = vadd.xlane.f32.xlu0 %v140
      %v194 = vpop.xlane.xlu0 %193
      %195 = vadd.xlane.f32.xlu0 %v141
      %v196 = vpop.xlane.xlu0 %195
      %197 = vadd.xlane.f32.xlu0 %v142
      %v198 = vpop.xlane.xlu0 %197
      %199 = vadd.xlane.f32.xlu0 %v143
      %v200 = vpop.xlane.xlu0 %199
      %201 = vadd.xlane.f32.xlu0 %v144
      %v202 = vpop.xlane.xlu0 %201
      %203 = vadd.xlane.f32.xlu0 %v145
      %v204 = vpop.xlane.xlu0 %203
      %205 = vadd.xlane.f32.xlu0 %v146
      %v206 = vpop.xlane.xlu0 %205
      %207 = vadd.xlane.f32.xlu0 %v147
      %v208 = vpop.xlane.xlu0 %207
      %209 = vadd.xlane.f32.xlu0 %v148
      %v210 = vpop.xlane.xlu0 %209
      %211 = vadd.xlane.f32.xlu0 %v149
      %v212 = vpop.xlane.xlu0 %211
      %213 = vadd.xlane.f32.xlu0 %v150
      %v214 = vpop.xlane.xlu0 %213
      %v215 = vmax.f32 %v152, 1e-24
      %v216 = vmax.f32 %v154, 1e-24
      %v217 = vmax.f32 %v156, 1e-24
      %v218 = vmax.f32 %v158, 1e-24
      %v219 = vmax.f32 %v160, 1e-24
      %v220 = vmax.f32 %v162, 1e-24
      %v221 = vmax.f32 %v164, 1e-24
      %v222 = vmax.f32 %v166, 1e-24
      %v223 = vmax.f32 %v168, 1e-24
      %v224 = vmax.f32 %v170, 1e-24
      %v225 = vmax.f32 %v172, 1e-24
      %v226 = vmax.f32 %v174, 1e-24
      %v227 = vmax.f32 %v176, 1e-24
      %v228 = vmax.f32 %v178, 1e-24
      %v229 = vmax.f32 %v180, 1e-24
      %v230 = vmax.f32 %v182, 1e-24
      %v231 = vmax.f32 %v184, 1e-24
      %v232 = vmax.f32 %v186, 1e-24
      %v233 = vmax.f32 %v188, 1e-24
      %v234 = vmax.f32 %v190, 1e-24
      %v235 = vmax.f32 %v192, 1e-24
      %v236 = vmax.f32 %v194, 1e-24
      %v237 = vmax.f32 %v196, 1e-24
      %v238 = vmax.f32 %v198, 1e-24
      %v239 = vmax.f32 %v200, 1e-24
      %v240 = vmax.f32 %v202, 1e-24
      %v241 = vmax.f32 %v204, 1e-24
      %v242 = vmax.f32 %v206, 1e-24
      %v243 = vmax.f32 %v208, 1e-24
      %v244 = vmax.f32 %v210, 1e-24
      %v245 = vmax.f32 %v212, 1e-24
      %v246 = vmax.f32 %v214, 1e-24
      %v247 = vrsqrt.pop %v215
      %v248 = vrsqrt.pop %v216
      %v249 = vrsqrt.pop %v217
      %v250 = vrsqrt.pop %v218
      %v251 = vrsqrt.pop %v219
      %v252 = vrsqrt.pop %v220
      %v253 = vrsqrt.pop %v221
      %v254 = vrsqrt.pop %v222
      %v255 = vrsqrt.pop %v223
      %v256 = vrsqrt.pop %v224
      %v257 = vrsqrt.pop %v225
      %v258 = vrsqrt.pop %v226
      %v259 = vrsqrt.pop %v227
      %v260 = vrsqrt.pop %v228
      %v261 = vrsqrt.pop %v229
      %v262 = vrsqrt.pop %v230
      %v263 = vrsqrt.pop %v231
      %v264 = vrsqrt.pop %v232
      %v265 = vrsqrt.pop %v233
      %v266 = vrsqrt.pop %v234
      %v267 = vrsqrt.pop %v235
      %v268 = vrsqrt.pop %v236
      %v269 = vrsqrt.pop %v237
      %v270 = vrsqrt.pop %v238
      %v271 = vrsqrt.pop %v239
      %v272 = vrsqrt.pop %v240
      %v273 = vrsqrt.pop %v241
      %v274 = vrsqrt.pop %v242
      %v275 = vrsqrt.pop %v243
      %v276 = vrsqrt.pop %v244
      %v277 = vrsqrt.pop %v245
      %v278 = vrsqrt.pop %v246
      %v279 = vmul.f32 %v87, %v247
      %v280 = vmul.f32 %v88, %v248
      %v281 = vmul.f32 %v89, %v249
      %v282 = vmul.f32 %v90, %v250
      %v283 = vmul.f32 %v91, %v251
      %v284 = vmul.f32 %v92, %v252
      %v285 = vmul.f32 %v93, %v253
      %v286 = vmul.f32 %v94, %v254
      %v287 = vmul.f32 %v95, %v255
      %v288 = vmul.f32 %v96, %v256
      %v289 = vmul.f32 %v97, %v257
      %v290 = vmul.f32 %v98, %v258
      %v291 = vmul.f32 %v99, %v259
      %v292 = vmul.f32 %v100, %v260
      %v293 = vmul.f32 %v101, %v261
      %v294 = vmul.f32 %v102, %v262
      %v295 = vmul.f32 %v103, %v263
      %v296 = vmul.f32 %v104, %v264
      %v297 = vmul.f32 %v105, %v265
      %v298 = vmul.f32 %v106, %v266
      %v299 = vmul.f32 %v107, %v267
      %v300 = vmul.f32 %v108, %v268
      %v301 = vmul.f32 %v109, %v269
      %v302 = vmul.f32 %v110, %v270
      %v303 = vmul.f32 %v111, %v271
      %v304 = vmul.f32 %v112, %v272
      %v305 = vmul.f32 %v113, %v273
      %v306 = vmul.f32 %v114, %v274
      %v307 = vmul.f32 %v115, %v275
      %v308 = vmul.f32 %v116, %v276
      %v309 = vmul.f32 %v117, %v277
      %v310 = vmul.f32 %v118, %v278
      %v311 = vpack.c.bf16 %v280, %v279
      %v312 = vpack.c.bf16 %v282, %v281
      %v313 = vpack.c.bf16 %v284, %v283
      %v314 = vpack.c.bf16 %v286, %v285
      %v315 = vpack.c.bf16 %v288, %v287
      %v316 = vpack.c.bf16 %v290, %v289
      %v317 = vpack.c.bf16 %v292, %v291
      %v318 = vpack.c.bf16 %v294, %v293
      %v319 = vpack.c.bf16 %v296, %v295
      %v320 = vpack.c.bf16 %v298, %v297
      %v321 = vpack.c.bf16 %v300, %v299
      %v322 = vpack.c.bf16 %v302, %v301
      %v323 = vpack.c.bf16 %v304, %v303
      %v324 = vpack.c.bf16 %v306, %v305
      %v325 = vpack.c.bf16 %v308, %v307
      %v326 = vpack.c.bf16 %v310, %v309
      %327 = vst [vmem:[#allocation2] sm:$0xff] %v311
      %328 = vst [vmem:[#allocation2 + $0x8] sm:$0xff] %v312
      %329 = vst [vmem:[#allocation2 + $0x10] sm:$0xff] %v313
      %330 = vst [vmem:[#allocation2 + $0x18] sm:$0xff] %v314
      %331 = vst [vmem:[#allocation2 + $0x20] sm:$0xff] %v315
      %332 = vst [vmem:[#allocation2 + $0x28] sm:$0xff] %v316
      %333 = vst [vmem:[#allocation2 + $0x30] sm:$0xff] %v317
      %334 = vst [vmem:[#allocation2 + $0x38] sm:$0xff] %v318
      %335 = vst [vmem:[#allocation2 + $0x40] sm:$0xff] %v319
      %336 = vst [vmem:[#allocation2 + $0x48] sm:$0xff] %v320
      %337 = vst [vmem:[#allocation2 + $0x50] sm:$0xff] %v321
      %338 = vst [vmem:[#allocation2 + $0x58] sm:$0xff] %v322
      %339 = vst [vmem:[#allocation2 + $0x60] sm:$0xff] %v323
      %340 = vst [vmem:[#allocation2 + $0x68] sm:$0xff] %v324
      %341 = vst [vmem:[#allocation2 + $0x70] sm:$0xff] %v325
      %342 = vst [vmem:[#allocation2 + $0x78] sm:$0xff] %v326
      %v343 = vlaneseq
      %vm344 = vcmp.ge.s32.totalorder %v343, 0
      %vm345 = vcmp.lt.s32.totalorder %v343, 256
      %vm346 = vmand %vm344, %vm345
      %347 = vst.msk [vmem:[#allocation8] sm:$0x3] %vm346, 0.0
      %vm348 = vcmask 0
      %349 = vst.msk [vmem:[#allocation9] sm:$0x1] %vm348, 0.0
      %350 = vst.msk [vmem:[#allocation11] sm:$0x1] %vm348, 0.0
    $region21: #{tpu_custom_call.1} parent=1 // pred_fallthru
      _
    %v351 = vld [vmem:[#allocation3] sm:$0xf]
    %v352 = vld [vmem:[#allocation3 + $0x4] sm:$0xf]
    %v353 = vld [vmem:[#allocation3 + $0x8] sm:$0xf]
    %v354 = vld [vmem:[#allocation3 + $0xc] sm:$0xf]
    %v355 = vld [vmem:[#allocation3 + $0x10] sm:$0xf]
    %v356 = vld [vmem:[#allocation3 + $0x14] sm:$0xf]
    %v357 = vld [vmem:[#allocation3 + $0x18] sm:$0xf]
    %v358 = vld [vmem:[#allocation3 + $0x1c] sm:$0xf]
    %v359 = vld [vmem:[#allocation3 + $0x20] sm:$0xf]
    %v360 = vld [vmem:[#allocation3 + $0x24] sm:$0xf]
    %v361 = vld [vmem:[#allocation3 + $0x28] sm:$0xf]
    %v362 = vld [vmem:[#allocation3 + $0x2c] sm:$0xf]
    %v363 = vld [vmem:[#allocation3 + $0x30] sm:$0xf]
    %v364 = vld [vmem:[#allocation3 + $0x34] sm:$0xf]
    %v365 = vld [vmem:[#allocation3 + $0x38] sm:$0xf]
    %v366 = vld [vmem:[#allocation3 + $0x3c] sm:$0xf]
    %v367 = vld [vmem:[#allocation3 + $0x40] sm:$0xf]
    %v368 = vld [vmem:[#allocation3 + $0x44] sm:$0xf]
    %v369 = vld [vmem:[#allocation3 + $0x48] sm:$0xf]
    %v370 = vld [vmem:[#allocation3 + $0x4c] sm:$0xf]
    %v371 = vld [vmem:[#allocation3 + $0x50] sm:$0xf]
    %v372 = vld [vmem:[#allocation3 + $0x54] sm:$0xf]
    %v373 = vld [vmem:[#allocation3 + $0x58] sm:$0xf]
    %v374 = vld [vmem:[#allocation3 + $0x5c] sm:$0xf]
    %v375 = vld [vmem:[#allocation3 + $0x60] sm:$0xf]
    %v376 = vld [vmem:[#allocation3 + $0x64] sm:$0xf]
    %v377 = vld [vmem:[#allocation3 + $0x68] sm:$0xf]
    %v378 = vld [vmem:[#allocation3 + $0x6c] sm:$0xf]
    %v379 = vld [vmem:[#allocation3 + $0x70] sm:$0xf]
    %v380 = vld [vmem:[#allocation3 + $0x74] sm:$0xf]
    %v381 = vld [vmem:[#allocation3 + $0x78] sm:$0xf]
    %v382 = vld [vmem:[#allocation3 + $0x7c] sm:$0xf]
    %v383 = vunpack.c.l.bf16 %v351
    %v384 = vunpack.c.l.bf16 %v352
    %v385 = vunpack.c.l.bf16 %v353
    %v386 = vunpack.c.l.bf16 %v354
    %v387 = vunpack.c.l.bf16 %v355
    %v388 = vunpack.c.l.bf16 %v356
    %v389 = vunpack.c.l.bf16 %v357
    %v390 = vunpack.c.l.bf16 %v358
    %v391 = vunpack.c.l.bf16 %v359
    %v392 = vunpack.c.l.bf16 %v360
    %v393 = vunpack.c.l.bf16 %v361
    %v394 = vunpack.c.l.bf16 %v362
    %v395 = vunpack.c.l.bf16 %v363
    %v396 = vunpack.c.l.bf16 %v364
    %v397 = vunpack.c.l.bf16 %v365
    %v398 = vunpack.c.l.bf16 %v366
    %v399 = vunpack.c.l.bf16 %v367
    %v400 = vunpack.c.l.bf16 %v368
    %v401 = vunpack.c.l.bf16 %v369
    %v402 = vunpack.c.l.bf16 %v370
    %v403 = vunpack.c.l.bf16 %v371
    %v404 = vunpack.c.l.bf16 %v372
    %v405 = vunpack.c.l.bf16 %v373
    %v406 = vunpack.c.l.bf16 %v374
    %v407 = vunpack.c.l.bf16 %v375
    %v408 = vunpack.c.l.bf16 %v376
    %v409 = vunpack.c.l.bf16 %v377
    %v410 = vunpack.c.l.bf16 %v378
    %v411 = vunpack.c.l.bf16 %v379
    %v412 = vunpack.c.l.bf16 %v380
    %v413 = vunpack.c.l.bf16 %v381
    %v414 = vunpack.c.l.bf16 %v382
    %v415 = vmul.f32 %v383, %v383
    %v416 = vmul.f32 %v384, %v384
    %v417 = vmul.f32 %v385, %v385
    %v418 = vmul.f32 %v386, %v386
    %v419 = vmul.f32 %v387, %v387
    %v420 = vmul.f32 %v388, %v388
    %v421 = vmul.f32 %v389, %v389
    %v422 = vmul.f32 %v390, %v390
    %v423 = vmul.f32 %v391, %v391
    %v424 = vmul.f32 %v392, %v392
    %v425 = vmul.f32 %v393, %v393
    %v426 = vmul.f32 %v394, %v394
    %v427 = vmul.f32 %v395, %v395
    %v428 = vmul.f32 %v396, %v396
    %v429 = vmul.f32 %v397, %v397
    %v430 = vmul.f32 %v398, %v398
    %v431 = vmul.f32 %v399, %v399
    %v432 = vmul.f32 %v400, %v400
    %v433 = vmul.f32 %v401, %v401
    %v434 = vmul.f32 %v402, %v402
    %v435 = vmul.f32 %v403, %v403
    %v436 = vmul.f32 %v404, %v404
    %v437 = vmul.f32 %v405, %v405
    %v438 = vmul.f32 %v406, %v406
    %v439 = vmul.f32 %v407, %v407
    %v440 = vmul.f32 %v408, %v408
    %v441 = vmul.f32 %v409, %v409
    %v442 = vmul.f32 %v410, %v410
    %v443 = vmul.f32 %v411, %v411
    %v444 = vmul.f32 %v412, %v412
    %v445 = vmul.f32 %v413, %v413
    %v446 = vmul.f32 %v414, %v414
    %447 = vadd.xlane.f32.xlu0 %v415
    %v448 = vpop.xlane.xlu0 %447
    %449 = vadd.xlane.f32.xlu0 %v416
    %v450 = vpop.xlane.xlu0 %449
    %451 = vadd.xlane.f32.xlu0 %v417
    %v452 = vpop.xlane.xlu0 %451
    %453 = vadd.xlane.f32.xlu0 %v418
    %v454 = vpop.xlane.xlu0 %453
    %455 = vadd.xlane.f32.xlu0 %v419
    %v456 = vpop.xlane.xlu0 %455
    %457 = vadd.xlane.f32.xlu0 %v420
    %v458 = vpop.xlane.xlu0 %457
    %459 = vadd.xlane.f32.xlu0 %v421
    %v460 = vpop.xlane.xlu0 %459
    %461 = vadd.xlane.f32.xlu0 %v422
    %v462 = vpop.xlane.xlu0 %461
    %463 = vadd.xlane.f32.xlu0 %v423
    %v464 = vpop.xlane.xlu0 %463
    %465 = vadd.xlane.f32.xlu0 %v424
    %v466 = vpop.xlane.xlu0 %465
    %467 = vadd.xlane.f32.xlu0 %v425
    %v468 = vpop.xlane.xlu0 %467
    %469 = vadd.xlane.f32.xlu0 %v426
    %v470 = vpop.xlane.xlu0 %469
    %471 = vadd.xlane.f32.xlu0 %v427
    %v472 = vpop.xlane.xlu0 %471
    %473 = vadd.xlane.f32.xlu0 %v428
    %v474 = vpop.xlane.xlu0 %473
    %475 = vadd.xlane.f32.xlu0 %v429
    %v476 = vpop.xlane.xlu0 %475
    %477 = vadd.xlane.f32.xlu0 %v430
    %v478 = vpop.xlane.xlu0 %477
    %479 = vadd.xlane.f32.xlu0 %v431
    %v480 = vpop.xlane.xlu0 %479
    %481 = vadd.xlane.f32.xlu0 %v432
    %v482 = vpop.xlane.xlu0 %481
    %483 = vadd.xlane.f32.xlu0 %v433
    %v484 = vpop.xlane.xlu0 %483
    %485 = vadd.xlane.f32.xlu0 %v434
    %v486 = vpop.xlane.xlu0 %485
    %487 = vadd.xlane.f32.xlu0 %v435
    %v488 = vpop.xlane.xlu0 %487
    %489 = vadd.xlane.f32.xlu0 %v436
    %v490 = vpop.xlane.xlu0 %489
    %491 = vadd.xlane.f32.xlu0 %v437
    %v492 = vpop.xlane.xlu0 %491
    %493 = vadd.xlane.f32.xlu0 %v438
    %v494 = vpop.xlane.xlu0 %493
    %495 = vadd.xlane.f32.xlu0 %v439
    %v496 = vpop.xlane.xlu0 %495
    %497 = vadd.xlane.f32.xlu0 %v440
    %v498 = vpop.xlane.xlu0 %497
    %499 = vadd.xlane.f32.xlu0 %v441
    %v500 = vpop.xlane.xlu0 %499
    %501 = vadd.xlane.f32.xlu0 %v442
    %v502 = vpop.xlane.xlu0 %501
    %503 = vadd.xlane.f32.xlu0 %v443
    %v504 = vpop.xlane.xlu0 %503
    %505 = vadd.xlane.f32.xlu0 %v444
    %v506 = vpop.xlane.xlu0 %505
    %507 = vadd.xlane.f32.xlu0 %v445
    %v508 = vpop.xlane.xlu0 %507
    %509 = vadd.xlane.f32.xlu0 %v446
    %v510 = vpop.xlane.xlu0 %509
    %v511 = vmax.f32 %v448, 1e-24
    %v512 = vmax.f32 %v450, 1e-24
    %v513 = vmax.f32 %v452, 1e-24
    %v514 = vmax.f32 %v454, 1e-24
    %v515 = vmax.f32 %v456, 1e-24
    %v516 = vmax.f32 %v458, 1e-24
    %v517 = vmax.f32 %v460, 1e-24
    %v518 = vmax.f32 %v462, 1e-24
    %v519 = vmax.f32 %v464, 1e-24
    %v520 = vmax.f32 %v466, 1e-24
    %v521 = vmax.f32 %v468, 1e-24
    %v522 = vmax.f32 %v470, 1e-24
    %v523 = vmax.f32 %v472, 1e-24
    %v524 = vmax.f32 %v474, 1e-24
    %v525 = vmax.f32 %v476, 1e-24
    %v526 = vmax.f32 %v478, 1e-24
    %v527 = vmax.f32 %v480, 1e-24
    %v528 = vmax.f32 %v482, 1e-24
    %v529 = vmax.f32 %v484, 1e-24
    %v530 = vmax.f32 %v486, 1e-24
    %v531 = vmax.f32 %v488, 1e-24
    %v532 = vmax.f32 %v490, 1e-24
    %v533 = vmax.f32 %v492, 1e-24
    %v534 = vmax.f32 %v494, 1e-24
    %v535 = vmax.f32 %v496, 1e-24
    %v536 = vmax.f32 %v498, 1e-24
    %v537 = vmax.f32 %v500, 1e-24
    %v538 = vmax.f32 %v502, 1e-24
    %v539 = vmax.f32 %v504, 1e-24
    %v540 = vmax.f32 %v506, 1e-24
    %v541 = vmax.f32 %v508, 1e-24
    %v542 = vmax.f32 %v510, 1e-24
    %v543 = vrsqrt.pop %v511
    %v544 = vrsqrt.pop %v512
    %v545 = vrsqrt.pop %v513
    %v546 = vrsqrt.pop %v514
    %v547 = vrsqrt.pop %v515
    %v548 = vrsqrt.pop %v516
    %v549 = vrsqrt.pop %v517
    %v550 = vrsqrt.pop %v518
    %v551 = vrsqrt.pop %v519
    %v552 = vrsqrt.pop %v520
    %v553 = vrsqrt.pop %v521
    %v554 = vrsqrt.pop %v522
    %v555 = vrsqrt.pop %v523
    %v556 = vrsqrt.pop %v524
    %v557 = vrsqrt.pop %v525
    %v558 = vrsqrt.pop %v526
    %v559 = vrsqrt.pop %v527
    %v560 = vrsqrt.pop %v528
    %v561 = vrsqrt.pop %v529
    %v562 = vrsqrt.pop %v530
    %v563 = vrsqrt.pop %v531
    %v564 = vrsqrt.pop %v532
    %v565 = vrsqrt.pop %v533
    %v566 = vrsqrt.pop %v534
    %v567 = vrsqrt.pop %v535
    %v568 = vrsqrt.pop %v536
    %v569 = vrsqrt.pop %v537
    %v570 = vrsqrt.pop %v538
    %v571 = vrsqrt.pop %v539
    %v572 = vrsqrt.pop %v540
    %v573 = vrsqrt.pop %v541
    %v574 = vrsqrt.pop %v542
    %v575 = vmul.f32 %v543, 10.0
    %v576 = vmul.f32 %v544, 10.0
    %v577 = vmul.f32 %v545, 10.0
    %v578 = vmul.f32 %v546, 10.0
    %v579 = vmul.f32 %v547, 10.0
    %v580 = vmul.f32 %v548, 10.0
    %v581 = vmul.f32 %v549, 10.0
    %v582 = vmul.f32 %v550, 10.0
    %v583 = vmul.f32 %v551, 10.0
    %v584 = vmul.f32 %v552, 10.0
    %v585 = vmul.f32 %v553, 10.0
    %v586 = vmul.f32 %v554, 10.0
    %v587 = vmul.f32 %v555, 10.0
    %v588 = vmul.f32 %v556, 10.0
    %v589 = vmul.f32 %v557, 10.0
    %v590 = vmul.f32 %v558, 10.0
    %v591 = vmul.f32 %v559, 10.0
    %v592 = vmul.f32 %v560, 10.0
    %v593 = vmul.f32 %v561, 10.0
    %v594 = vmul.f32 %v562, 10.0
    %v595 = vmul.f32 %v563, 10.0
    %v596 = vmul.f32 %v564, 10.0
    %v597 = vmul.f32 %v565, 10.0
    %v598 = vmul.f32 %v566, 10.0
    %v599 = vmul.f32 %v567, 10.0
    %v600 = vmul.f32 %v568, 10.0
    %v601 = vmul.f32 %v569, 10.0
    %v602 = vmul.f32 %v570, 10.0
    %v603 = vmul.f32 %v571, 10.0
    %v604 = vmul.f32 %v572, 10.0
    %v605 = vmul.f32 %v573, 10.0
    %v606 = vmul.f32 %v574, 10.0
    %v607 = vmul.f32 %v383, %v575
    %v608 = vmul.f32 %v384, %v576
    %v609 = vmul.f32 %v385, %v577
    %v610 = vmul.f32 %v386, %v578
    %v611 = vmul.f32 %v387, %v579
    %v612 = vmul.f32 %v388, %v580
    %v613 = vmul.f32 %v389, %v581
    %v614 = vmul.f32 %v390, %v582
    %v615 = vmul.f32 %v391, %v583
    %v616 = vmul.f32 %v392, %v584
    %v617 = vmul.f32 %v393, %v585
    %v618 = vmul.f32 %v394, %v586
    %v619 = vmul.f32 %v395, %v587
    %v620 = vmul.f32 %v396, %v588
    %v621 = vmul.f32 %v397, %v589
    %v622 = vmul.f32 %v398, %v590
    %v623 = vmul.f32 %v399, %v591
    %v624 = vmul.f32 %v400, %v592
    %v625 = vmul.f32 %v401, %v593
    %v626 = vmul.f32 %v402, %v594
    %v627 = vmul.f32 %v403, %v595
    %v628 = vmul.f32 %v404, %v596
    %v629 = vmul.f32 %v405, %v597
    %v630 = vmul.f32 %v406, %v598
    %v631 = vmul.f32 %v407, %v599
    %v632 = vmul.f32 %v408, %v600
    %v633 = vmul.f32 %v409, %v601
    %v634 = vmul.f32 %v410, %v602
    %v635 = vmul.f32 %v411, %v603
    %v636 = vmul.f32 %v412, %v604
    %v637 = vmul.f32 %v413, %v605
    %v638 = vmul.f32 %v414, %v606
    %v639 = vpack.c.bf16 %v608, %v607
    %v640 = vpack.c.bf16 %v610, %v609
    %v641 = vpack.c.bf16 %v612, %v611
    %v642 = vpack.c.bf16 %v614, %v613
    %v643 = vpack.c.bf16 %v616, %v615
    %v644 = vpack.c.bf16 %v618, %v617
    %v645 = vpack.c.bf16 %v620, %v619
    %v646 = vpack.c.bf16 %v622, %v621
    %v647 = vpack.c.bf16 %v624, %v623
    %v648 = vpack.c.bf16 %v626, %v625
    %v649 = vpack.c.bf16 %v628, %v627
    %v650 = vpack.c.bf16 %v630, %v629
    %v651 = vpack.c.bf16 %v632, %v631
    %v652 = vpack.c.bf16 %v634, %v633
    %v653 = vpack.c.bf16 %v636, %v635
    %v654 = vpack.c.bf16 %v638, %v637
    %v655 = vld [vmem:[#allocation2] sm:$0xff]
    %v656 = vld [vmem:[#allocation2 + $0x8] sm:$0xff]
    %v657 = vld [vmem:[#allocation2 + $0x10] sm:$0xff]
    %v658 = vld [vmem:[#allocation2 + $0x18] sm:$0xff]
    %v659 = vld [vmem:[#allocation2 + $0x20] sm:$0xff]
    %v660 = vld [vmem:[#allocation2 + $0x28] sm:$0xff]
    %v661 = vld [vmem:[#allocation2 + $0x30] sm:$0xff]
    %v662 = vld [vmem:[#allocation2 + $0x38] sm:$0xff]
    %v663 = vld [vmem:[#allocation2 + $0x40] sm:$0xff]
    %v664 = vld [vmem:[#allocation2 + $0x48] sm:$0xff]
    %v665 = vld [vmem:[#allocation2 + $0x50] sm:$0xff]
    %v666 = vld [vmem:[#allocation2 + $0x58] sm:$0xff]
    %v667 = vld [vmem:[#allocation2 + $0x60] sm:$0xff]
    %v668 = vld [vmem:[#allocation2 + $0x68] sm:$0xff]
    %v669 = vld [vmem:[#allocation2 + $0x70] sm:$0xff]
    %v670 = vld [vmem:[#allocation2 + $0x78] sm:$0xff]
    %671 = vmatprep.subr.bf16.mxu0 0
    %672 = vmatpush1.bf16.xpose.msra.mxu0 %v655
    %673 = vmatprep.subr.bf16.mxu0 0
    %674 = vmatpush1.bf16.xpose.msra.mxu0 %v656
    %675 = vmatprep.subr.bf16.mxu0 0
    %676 = vmatpush1.bf16.xpose.msra.mxu0 %v657
    %677 = vmatprep.subr.bf16.mxu0 0
    %678 = vmatpush1.bf16.xpose.msra.mxu0 %v658
    %679 = vmatprep.subr.bf16.mxu0 0
    %680 = vmatpush1.bf16.xpose.msra.mxu0 %v659
    %681 = vmatprep.subr.bf16.mxu0 0
    %682 = vmatpush1.bf16.xpose.msra.mxu0 %v660
    %683 = vmatprep.subr.bf16.mxu0 0
    %684 = vmatpush1.bf16.xpose.msra.mxu0 %v661
    %685 = vmatprep.subr.bf16.mxu0 0
    %686 = vmatpush1.bf16.xpose.msra.mxu0 %v662
    %687 = vmatprep.subr.bf16.mxu0 0
    %688 = vmatpush1.bf16.xpose.msra.mxu0 %v663
    %689 = vmatprep.subr.bf16.mxu0 0
    %690 = vmatpush1.bf16.xpose.msra.mxu0 %v664
    %691 = vmatprep.subr.bf16.mxu0 0
    %692 = vmatpush1.bf16.xpose.msra.mxu0 %v665
    %693 = vmatprep.subr.bf16.mxu0 0
    %694 = vmatpush1.bf16.xpose.msra.mxu0 %v666
    %695 = vmatprep.subr.bf16.mxu0 0
    %696 = vmatpush1.bf16.xpose.msra.mxu0 %v667
    %697 = vmatprep.subr.bf16.mxu0 0
    %698 = vmatpush1.bf16.xpose.msra.mxu0 %v668
    %699 = vmatprep.subr.bf16.mxu0 0
    %700 = vmatpush1.bf16.xpose.msra.mxu0 %v669
    %701 = vmatprep.subr.bf16.mxu0 0
    %702 = vmatpush1.bf16.xpose.msra.mxu0 %v670
    %703 = vmatprep.mubr.bf16.mxu0 0
    %704 = vmatmul.mubr.bf16.gmra.mrb[0].mxu0 %v639
    %v705 = vpop.f32.mrb[0].mxu0
    %v706 = vadd.f32 0.0, %v705
    %v707 = vpop.f32.mrb[0].mxu0
    %v708 = vadd.f32 0.0, %v707
    %v709 = vpop.f32.mrb[0].mxu0
    %v710 = vadd.f32 0.0, %v709
    %v711 = vpop.f32.mrb[0].mxu0
    %v712 = vadd.f32 0.0, %v711
    %713 = vmatprep.mubr.bf16.mxu0 0
    %714 = vmatmul.mubr.bf16.gmra.mrb[0].mxu0 %v640
    %v715 = vpop.f32.mrb[0].mxu0
    %v716 = vadd.f32 0.0, %v715
    %v717 = vpop.f32.mrb[0].mxu0
    %v718 = vadd.f32 0.0, %v717
    %v719 = vpop.f32.mrb[0].mxu0
    %v720 = vadd.f32 0.0, %v719
    %v721 = vpop.f32.mrb[0].mxu0
    %v722 = vadd.f32 0.0, %v721
    %723 = vmatprep.mubr.bf16.mxu0 0
    %724 = vmatmul.mubr.bf16.gmra.mrb[0].mxu0 %v641
    %v725 = vpop.f32.mrb[0].mxu0
    %v726 = vadd.f32 0.0, %v725
    %v727 = vpop.f32.mrb[0].mxu0
    %v728 = vadd.f32 0.0, %v727
    %v729 = vpop.f32.mrb[0].mxu0
    %v730 = vadd.f32 0.0, %v729
    %v731 = vpop.f32.mrb[0].mxu0
    %v732 = vadd.f32 0.0, %v731
    %733 = vmatprep.mubr.bf16.mxu0 0
    %734 = vmatmul.mubr.bf16.gmra.mrb[0].mxu0 %v642
    %v735 = vpop.f32.mrb[0].mxu0
    %v736 = vadd.f32 0.0, %v735
    %v737 = vpop.f32.mrb[0].mxu0
    %v738 = vadd.f32 0.0, %v737
    %v739 = vpop.f32.mrb[0].mxu0
    %v740 = vadd.f32 0.0, %v739
    %v741 = vpop.f32.mrb[0].mxu0
    %v742 = vadd.f32 0.0, %v741
    %743 = vmatprep.mubr.bf16.mxu0 0
    %744 = vmatmul.mubr.bf16.gmra.mrb[0].mxu0 %v643
    %v745 = vpop.f32.mrb[0].mxu0
    %v746 = vadd.f32 0.0, %v745
    %v747 = vpop.f32.mrb[0].mxu0
    %v748 = vadd.f32 0.0, %v747
    %v749 = vpop.f32.mrb[0].mxu0
    %v750 = vadd.f32 0.0, %v749
    %v751 = vpop.f32.mrb[0].mxu0
    %v752 = vadd.f32 0.0, %v751
    %753 = vmatprep.mubr.bf16.mxu0 0
    %754 = vmatmul.mubr.bf16.gmra.mrb[0].mxu0 %v644
    %v755 = vpop.f32.mrb[0].mxu0
    %v756 = vadd.f32 0.0, %v755
    %v757 = vpop.f32.mrb[0].mxu0
    %v758 = vadd.f32 0.0, %v757
    %v759 = vpop.f32.mrb[0].mxu0
    %v760 = vadd.f32 0.0, %v759
    %v761 = vpop.f32.mrb[0].mxu0
    %v762 = vadd.f32 0.0, %v761
    %763 = vmatprep.mubr.bf16.mxu0 0
    %764 = vmatmul.mubr.bf16.gmra.mrb[0].mxu0 %v645
    %v765 = vpop.f32.mrb[0].mxu0
    %v766 = vadd.f32 0.0, %v765
    %v767 = vpop.f32.mrb[0].mxu0
    %v768 = vadd.f32 0.0, %v767
    %v769 = vpop.f32.mrb[0].mxu0
    %v770 = vadd.f32 0.0, %v769
    %v771 = vpop.f32.mrb[0].mxu0
    %v772 = vadd.f32 0.0, %v771
    %773 = vmatprep.mubr.bf16.mxu0 0
    %774 = vmatmul.mubr.bf16.gmra.mrb[0].mxu0 %v646
    %v775 = vpop.f32.mrb[0].mxu0
    %v776 = vadd.f32 0.0, %v775
    %v777 = vpop.f32.mrb[0].mxu0
    %v778 = vadd.f32 0.0, %v777
    %v779 = vpop.f32.mrb[0].mxu0
    %v780 = vadd.f32 0.0, %v779
    %v781 = vpop.f32.mrb[0].mxu0
    %v782 = vadd.f32 0.0, %v781
    %783 = vmatprep.mubr.bf16.mxu0 0
    %784 = vmatmul.mubr.bf16.gmra.mrb[0].mxu0 %v647
    %v785 = vpop.f32.mrb[0].mxu0
    %v786 = vadd.f32 0.0, %v785
    %v787 = vpop.f32.mrb[0].mxu0
    %v788 = vadd.f32 0.0, %v787
    %v789 = vpop.f32.mrb[0].mxu0
    %v790 = vadd.f32 0.0, %v789
    %v791 = vpop.f32.mrb[0].mxu0
    %v792 = vadd.f32 0.0, %v791
    %793 = vmatprep.mubr.bf16.mxu0 0
    %794 = vmatmul.mubr.bf16.gmra.mrb[0].mxu0 %v648
    %v795 = vpop.f32.mrb[0].mxu0
    %v796 = vadd.f32 0.0, %v795
    %v797 = vpop.f32.mrb[0].mxu0
    %v798 = vadd.f32 0.0, %v797
    %v799 = vpop.f32.mrb[0].mxu0
    %v800 = vadd.f32 0.0, %v799
    %v801 = vpop.f32.mrb[0].mxu0
    %v802 = vadd.f32 0.0, %v801
    %803 = vmatprep.mubr.bf16.mxu0 0
    %804 = vmatmul.mubr.bf16.gmra.mrb[0].mxu0 %v649
    %v805 = vpop.f32.mrb[0].mxu0
    %v806 = vadd.f32 0.0, %v805
    %v807 = vpop.f32.mrb[0].mxu0
    %v808 = vadd.f32 0.0, %v807
    %v809 = vpop.f32.mrb[0].mxu0
    %v810 = vadd.f32 0.0, %v809
    %v811 = vpop.f32.mrb[0].mxu0
    %v812 = vadd.f32 0.0, %v811
    %813 = vmatprep.mubr.bf16.mxu0 0
    %814 = vmatmul.mubr.bf16.gmra.mrb[0].mxu0 %v650
    %v815 = vpop.f32.mrb[0].mxu0
    %v816 = vadd.f32 0.0, %v815
    %v817 = vpop.f32.mrb[0].mxu0
    %v818 = vadd.f32 0.0, %v817
    %v819 = vpop.f32.mrb[0].mxu0
    %v820 = vadd.f32 0.0, %v819
    %v821 = vpop.f32.mrb[0].mxu0
    %v822 = vadd.f32 0.0, %v821
    %823 = vmatprep.mubr.bf16.mxu0 0
    %824 = vmatmul.mubr.bf16.gmra.mrb[0].mxu0 %v651
    %v825 = vpop.f32.mrb[0].mxu0
    %v826 = vadd.f32 0.0, %v825
    %v827 = vpop.f32.mrb[0].mxu0
    %v828 = vadd.f32 0.0, %v827
    %v829 = vpop.f32.mrb[0].mxu0
    %v830 = vadd.f32 0.0, %v829
    %v831 = vpop.f32.mrb[0].mxu0
    %v832 = vadd.f32 0.0, %v831
    %833 = vmatprep.mubr.bf16.mxu0 0
    %834 = vmatmul.mubr.bf16.gmra.mrb[0].mxu0 %v652
    %v835 = vpop.f32.mrb[0].mxu0
    %v836 = vadd.f32 0.0, %v835
    %v837 = vpop.f32.mrb[0].mxu0
    %v838 = vadd.f32 0.0, %v837
    %v839 = vpop.f32.mrb[0].mxu0
    %v840 = vadd.f32 0.0, %v839
    %v841 = vpop.f32.mrb[0].mxu0
    %v842 = vadd.f32 0.0, %v841
    %843 = vmatprep.mubr.bf16.mxu0 0
    %844 = vmatmul.mubr.bf16.gmra.mrb[0].mxu0 %v653
    %v845 = vpop.f32.mrb[0].mxu0
    %v846 = vadd.f32 0.0, %v845
    %v847 = vpop.f32.mrb[0].mxu0
    %v848 = vadd.f32 0.0, %v847
    %v849 = vpop.f32.mrb[0].mxu0
    %v850 = vadd.f32 0.0, %v849
    %v851 = vpop.f32.mrb[0].mxu0
    %v852 = vadd.f32 0.0, %v851
    %853 = vmatprep.mubr.bf16.mxu0 0
    %854 = vmatmul.mubr.bf16.gmra.mrb[0].mxu0 %v654
    %v855 = vpop.f32.mrb[0].mxu0
    %v856 = vadd.f32 0.0, %v855
    %v857 = vpop.f32.mrb[0].mxu0
    %v858 = vadd.f32 0.0, %v857
    %v859 = vpop.f32.mrb[0].mxu0
    %v860 = vadd.f32 0.0, %v859
    %v861 = vpop.f32.mrb[0].mxu0
    %v862 = vadd.f32 0.0, %v861
    %863 = vdwg.mxu0
    %s864 = sadd.s32 0, 0
    %s865 = smul.u32 %s864, 256
    %s866 = sshra.s32 %s865, 4
    %s867 = sand.u32 %s865, 15
    %s868 = smul.addr %s866, 8
    %s869 = scalar_lea.vmem [#allocation2], %s868
    %v870 = vld [vmem:[%s869] sm:$0xff]
    %v871 = vld [vmem:[%s869 + $0x8] sm:$0xff]
    %v872 = vld [vmem:[%s869 + $0x10] sm:$0xff]
    %v873 = vld [vmem:[%s869 + $0x18] sm:$0xff]
    %v874 = vld [vmem:[%s869 + $0x20] sm:$0xff]
    %v875 = vld [vmem:[%s869 + $0x28] sm:$0xff]
    %v876 = vld [vmem:[%s869 + $0x30] sm:$0xff]
    %v877 = vld [vmem:[%s869 + $0x38] sm:$0xff]
    %v878 = vld [vmem:[%s869 + $0x40] sm:$0xff]
    %v879 = vld [vmem:[%s869 + $0x48] sm:$0xff]
    %v880 = vld [vmem:[%s869 + $0x50] sm:$0xff]
    %v881 = vld [vmem:[%s869 + $0x58] sm:$0xff]
    %v882 = vld [vmem:[%s869 + $0x60] sm:$0xff]
    %v883 = vld [vmem:[%s869 + $0x68] sm:$0xff]
    %v884 = vld [vmem:[%s869 + $0x70] sm:$0xff]
    %v885 = vld [vmem:[%s869 + $0x78] sm:$0xff]
    %v886 = vunpack.c.l.bf16 %v870
    %v887 = vunpack.c.h.bf16 %v870
    %v888 = vunpack.c.l.bf16 %v871
    %v889 = vunpack.c.h.bf16 %v871
    %v890 = vunpack.c.l.bf16 %v872
    %v891 = vunpack.c.h.bf16 %v872
    %v892 = vunpack.c.l.bf16 %v873
    %v893 = vunpack.c.h.bf16 %v873
    %v894 = vunpack.c.l.bf16 %v874
    %v895 = vunpack.c.h.bf16 %v874
    %v896 = vunpack.c.l.bf16 %v875
    %v897 = vunpack.c.h.bf16 %v875
    %v898 = vunpack.c.l.bf16 %v876
    %v899 = vunpack.c.h.bf16 %v876
    %v900 = vunpack.c.l.bf16 %v877
    %v901 = vunpack.c.h.bf16 %v877
    %v902 = vunpack.c.l.bf16 %v878
    %v903 = vunpack.c.h.bf16 %v878
    %v904 = vunpack.c.l.bf16 %v879
    %v905 = vunpack.c.h.bf16 %v879
    %v906 = vunpack.c.l.bf16 %v880
    %v907 = vunpack.c.h.bf16 %v880
    %v908 = vunpack.c.l.bf16 %v881
    %v909 = vunpack.c.h.bf16 %v881
    %v910 = vunpack.c.l.bf16 %v882
    %v911 = vunpack.c.h.bf16 %v882
    %v912 = vunpack.c.l.bf16 %v883
    %v913 = vunpack.c.h.bf16 %v883
    %v914 = vunpack.c.l.bf16 %v884
    %v915 = vunpack.c.h.bf16 %v884
    %v916 = vunpack.c.l.bf16 %v885
    %v917 = vunpack.c.h.bf16 %v885
    %v918 = vunpack.c.l.bf16 %v639
    %v919 = vunpack.c.h.bf16 %v639
    %v920 = vunpack.c.l.bf16 %v640
    %v921 = vunpack.c.h.bf16 %v640
    %v922 = vunpack.c.l.bf16 %v641
    %v923 = vunpack.c.h.bf16 %v641
    %v924 = vunpack.c.l.bf16 %v642
    %v925 = vunpack.c.h.bf16 %v642
    %v926 = vunpack.c.l.bf16 %v643
    %v927 = vunpack.c.h.bf16 %v643
    %v928 = vunpack.c.l.bf16 %v644
    %v929 = vunpack.c.h.bf16 %v644
    %v930 = vunpack.c.l.bf16 %v645
    %v931 = vunpack.c.h.bf16 %v645
    %v932 = vunpack.c.l.bf16 %v646
    %v933 = vunpack.c.h.bf16 %v646
    %v934 = vunpack.c.l.bf16 %v647
    %v935 = vunpack.c.h.bf16 %v647
    %v936 = vunpack.c.l.bf16 %v648
    %v937 = vunpack.c.h.bf16 %v648
    %v938 = vunpack.c.l.bf16 %v649
    %v939 = vunpack.c.h.bf16 %v649
    %v940 = vunpack.c.l.bf16 %v650
    %v941 = vunpack.c.h.bf16 %v650
    %v942 = vunpack.c.l.bf16 %v651
    %v943 = vunpack.c.h.bf16 %v651
    %v944 = vunpack.c.l.bf16 %v652
    %v945 = vunpack.c.h.bf16 %v652
    %v946 = vunpack.c.l.bf16 %v653
    %v947 = vunpack.c.h.bf16 %v653
    %v948 = vunpack.c.l.bf16 %v654
    %v949 = vunpack.c.h.bf16 %v654
    %v950 = vmul.f32 %v918, %v886
    %v951 = vmul.f32 %v919, %v887
    %v952 = vmul.f32 %v920, %v888
    %v953 = vmul.f32 %v921, %v889
    %v954 = vmul.f32 %v922, %v890
    %v955 = vmul.f32 %v923, %v891
    %v956 = vmul.f32 %v924, %v892
    %v957 = vmul.f32 %v925, %v893
    %v958 = vmul.f32 %v926, %v894
    %v959 = vmul.f32 %v927, %v895
    %v960 = vmul.f32 %v928, %v896
    %v961 = vmul.f32 %v929, %v897
    %v962 = vmul.f32 %v930, %v898
    %v963 = vmul.f32 %v931, %v899
    %v964 = vmul.f32 %v932, %v900
    %v965 = vmul.f32 %v933, %v901
    %v966 = vmul.f32 %v934, %v902
    %v967 = vmul.f32 %v935, %v903
    %v968 = vmul.f32 %v936, %v904
    %v969 = vmul.f32 %v937, %v905
    %v970 = vmul.f32 %v938, %v906
    %v971 = vmul.f32 %v939, %v907
    %v972 = vmul.f32 %v940, %v908
    %v973 = vmul.f32 %v941, %v909
    %v974 = vmul.f32 %v942, %v910
    %v975 = vmul.f32 %v943, %v911
    %v976 = vmul.f32 %v944, %v912
    %v977 = vmul.f32 %v945, %v913
    %v978 = vmul.f32 %v946, %v914
    %v979 = vmul.f32 %v947, %v915
    %v980 = vmul.f32 %v948, %v916
    %v981 = vmul.f32 %v949, %v917
    %982 = vadd.xlane.f32.xlu0 %v950
    %v983 = vpop.xlane.xlu0 %982
    %984 = vadd.xlane.f32.xlu0 %v951
    %v985 = vpop.xlane.xlu0 %984
    %986 = vadd.xlane.f32.xlu0 %v952
    %v987 = vpop.xlane.xlu0 %986
    %988 = vadd.xlane.f32.xlu0 %v953
    %v989 = vpop.xlane.xlu0 %988
    %990 = vadd.xlane.f32.xlu0 %v954
    %v991 = vpop.xlane.xlu0 %990
    %992 = vadd.xlane.f32.xlu0 %v955
    %v993 = vpop.xlane.xlu0 %992
    %994 = vadd.xlane.f32.xlu0 %v956
    %v995 = vpop.xlane.xlu0 %994
    %996 = vadd.xlane.f32.xlu0 %v957
    %v997 = vpop.xlane.xlu0 %996
    %998 = vadd.xlane.f32.xlu0 %v958
    %v999 = vpop.xlane.xlu0 %998
    %1000 = vadd.xlane.f32.xlu0 %v959
    %v1001 = vpop.xlane.xlu0 %1000
    %1002 = vadd.xlane.f32.xlu0 %v960
    %v1003 = vpop.xlane.xlu0 %1002
    %1004 = vadd.xlane.f32.xlu0 %v961
    %v1005 = vpop.xlane.xlu0 %1004
    %1006 = vadd.xlane.f32.xlu0 %v962
    %v1007 = vpop.xlane.xlu0 %1006
    %1008 = vadd.xlane.f32.xlu0 %v963
    %v1009 = vpop.xlane.xlu0 %1008
    %1010 = vadd.xlane.f32.xlu0 %v964
    %v1011 = vpop.xlane.xlu0 %1010
    %1012 = vadd.xlane.f32.xlu0 %v965
    %v1013 = vpop.xlane.xlu0 %1012
    %1014 = vadd.xlane.f32.xlu0 %v966
    %v1015 = vpop.xlane.xlu0 %1014
    %1016 = vadd.xlane.f32.xlu0 %v967
    %v1017 = vpop.xlane.xlu0 %1016
    %1018 = vadd.xlane.f32.xlu0 %v968
    %v1019 = vpop.xlane.xlu0 %1018
    %1020 = vadd.xlane.f32.xlu0 %v969
    %v1021 = vpop.xlane.xlu0 %1020
    %1022 = vadd.xlane.f32.xlu0 %v970
    %v1023 = vpop.xlane.xlu0 %1022
    %1024 = vadd.xlane.f32.xlu0 %v971
    %v1025 = vpop.xlane.xlu0 %1024
    %1026 = vadd.xlane.f32.xlu0 %v972
    %v1027 = vpop.xlane.xlu0 %1026
    %1028 = vadd.xlane.f32.xlu0 %v973
    %v1029 = vpop.xlane.xlu0 %1028
    %1030 = vadd.xlane.f32.xlu0 %v974
    %v1031 = vpop.xlane.xlu0 %1030
    %1032 = vadd.xlane.f32.xlu0 %v975
    %v1033 = vpop.xlane.xlu0 %1032
    %1034 = vadd.xlane.f32.xlu0 %v976
    %v1035 = vpop.xlane.xlu0 %1034
    %1036 = vadd.xlane.f32.xlu0 %v977
    %v1037 = vpop.xlane.xlu0 %1036
    %1038 = vadd.xlane.f32.xlu0 %v978
    %v1039 = vpop.xlane.xlu0 %1038
    %1040 = vadd.xlane.f32.xlu0 %v979
    %v1041 = vpop.xlane.xlu0 %1040
    %1042 = vadd.xlane.f32.xlu0 %v980
    %v1043 = vpop.xlane.xlu0 %1042
    %1044 = vadd.xlane.f32.xlu0 %v981
    %v1045 = vpop.xlane.xlu0 %1044
    %v1046 = vlaneseq
    %v1047 = vand.u32 %v1046, 127
    %v1048 = vadd.s32 %v1047, 128
    %vm1049 = vcmp.lt.s32.totalorder %v1047, 8
    %vm1050 = vcmp.lt.s32.totalorder %v1048, 8
    %v1051 = vlaneseq
    %v1052 = vshrl.u32 %v1051, 7
    %v1053 = vadd.s32 %v1052, 8
    %v1054 = vadd.s32 %v1052, 16
    %v1055 = vadd.s32 %v1052, 24
    %v1056 = vadd.s32 %v1052, 32
    %v1057 = vadd.s32 %v1052, 40
    %v1058 = vadd.s32 %v1052, 48
    %v1059 = vadd.s32 %v1052, 56
    %v1060 = vadd.s32 %v1052, 64
    %v1061 = vadd.s32 %v1052, 72
    %v1062 = vadd.s32 %v1052, 80
    %v1063 = vadd.s32 %v1052, 88
    %v1064 = vadd.s32 %v1052, 96
    %v1065 = vadd.s32 %v1052, 104
    %v1066 = vadd.s32 %v1052, 112
    %v1067 = vadd.s32 %v1052, 120
    %v1068 = vadd.s32 %v1052, 128
    %v1069 = vadd.s32 %v1052, 136
    %v1070 = vadd.s32 %v1052, 144
    %v1071 = vadd.s32 %v1052, 152
    %v1072 = vadd.s32 %v1052, 160
    %v1073 = vadd.s32 %v1052, 168
    %v1074 = vadd.s32 %v1052, 176
    %v1075 = vadd.s32 %v1052, 184
    %v1076 = vadd.s32 %v1052, 192
    %v1077 = vadd.s32 %v1052, 200
    %v1078 = vadd.s32 %v1052, 208
    %v1079 = vadd.s32 %v1052, 216
    %v1080 = vadd.s32 %v1052, 224
    %v1081 = vadd.s32 %v1052, 232
    %v1082 = vadd.s32 %v1052, 240
    %v1083 = vadd.s32 %v1052, 248
    %v1084 = vstv %s865
    %v1085 = vadd.s32 %v1052, %v1084
    %v1086 = vadd.s32 %v1053, %v1084
    %v1087 = vadd.s32 %v1054, %v1084
    %v1088 = vadd.s32 %v1055, %v1084
    %v1089 = vadd.s32 %v1056, %v1084
    %v1090 = vadd.s32 %v1057, %v1084
    %v1091 = vadd.s32 %v1058, %v1084
    %v1092 = vadd.s32 %v1059, %v1084
    %v1093 = vadd.s32 %v1060, %v1084
    %v1094 = vadd.s32 %v1061, %v1084
    %v1095 = vadd.s32 %v1062, %v1084
    %v1096 = vadd.s32 %v1063, %v1084
    %v1097 = vadd.s32 %v1064, %v1084
    %v1098 = vadd.s32 %v1065, %v1084
    %v1099 = vadd.s32 %v1066, %v1084
    %v1100 = vadd.s32 %v1067, %v1084
    %v1101 = vadd.s32 %v1068, %v1084
    %v1102 = vadd.s32 %v1069, %v1084
    %v1103 = vadd.s32 %v1070, %v1084
    %v1104 = vadd.s32 %v1071, %v1084
    %v1105 = vadd.s32 %v1072, %v1084
    %v1106 = vadd.s32 %v1073, %v1084
    %v1107 = vadd.s32 %v1074, %v1084
    %v1108 = vadd.s32 %v1075, %v1084
    %v1109 = vadd.s32 %v1076, %v1084
    %v1110 = vadd.s32 %v1077, %v1084
    %v1111 = vadd.s32 %v1078, %v1084
    %v1112 = vadd.s32 %v1079, %v1084
    %v1113 = vadd.s32 %v1080, %v1084
    %v1114 = vadd.s32 %v1081, %v1084
    %v1115 = vadd.s32 %v1082, %v1084
    %v1116 = vadd.s32 %v1083, %v1084
    %vm1117 = vcmp.lt.s32.totalorder %v1085, 8
    %vm1118 = vcmp.lt.s32.totalorder %v1086, 8
    %vm1119 = vcmp.lt.s32.totalorder %v1087, 8
    %vm1120 = vcmp.lt.s32.totalorder %v1088, 8
    %vm1121 = vcmp.lt.s32.totalorder %v1089, 8
    %vm1122 = vcmp.lt.s32.totalorder %v1090, 8
    %vm1123 = vcmp.lt.s32.totalorder %v1091, 8
    %vm1124 = vcmp.lt.s32.totalorder %v1092, 8
    %vm1125 = vcmp.lt.s32.totalorder %v1093, 8
    %vm1126 = vcmp.lt.s32.totalorder %v1094, 8
    %vm1127 = vcmp.lt.s32.totalorder %v1095, 8
    %vm1128 = vcmp.lt.s32.totalorder %v1096, 8
    %vm1129 = vcmp.lt.s32.totalorder %v1097, 8
    %vm1130 = vcmp.lt.s32.totalorder %v1098, 8
    %vm1131 = vcmp.lt.s32.totalorder %v1099, 8
    %vm1132 = vcmp.lt.s32.totalorder %v1100, 8
    %vm1133 = vcmp.lt.s32.totalorder %v1101, 8
    %vm1134 = vcmp.lt.s32.totalorder %v1102, 8
    %vm1135 = vcmp.lt.s32.totalorder %v1103, 8
    %vm1136 = vcmp.lt.s32.totalorder %v1104, 8
    %vm1137 = vcmp.lt.s32.totalorder %v1105, 8
    %vm1138 = vcmp.lt.s32.totalorder %v1106, 8
    %vm1139 = vcmp.lt.s32.totalorder %v1107, 8
    %vm1140 = vcmp.lt.s32.totalorder %v1108, 8
    %vm1141 = vcmp.lt.s32.totalorder %v1109, 8
    %vm1142 = vcmp.lt.s32.totalorder %v1110, 8
    %vm1143 = vcmp.lt.s32.totalorder %v1111, 8
    %vm1144 = vcmp.lt.s32.totalorder %v1112, 8
    %vm1145 = vcmp.lt.s32.totalorder %v1113, 8
    %vm1146 = vcmp.lt.s32.totalorder %v1114, 8
    %vm1147 = vcmp.lt.s32.totalorder %v1115, 8
    %vm1148 = vcmp.lt.s32.totalorder %v1116, 8
    %v1149 = vsub.f32 %v706, 10.0
    %v1150 = vsub.f32 %v708, 10.0
    %v1151 = vsub.f32 %v710, 10.0
    %v1152 = vsub.f32 %v712, 10.0
    %v1153 = vsub.f32 %v716, 10.0
    %v1154 = vsub.f32 %v718, 10.0
    %v1155 = vsub.f32 %v720, 10.0
    %v1156 = vsub.f32 %v722, 10.0
    %v1157 = vsub.f32 %v726, 10.0
    %v1158 = vsub.f32 %v728, 10.0
    %v1159 = vsub.f32 %v730, 10.0
    %v1160 = vsub.f32 %v732, 10.0
    %v1161 = vsub.f32 %v736, 10.0
    %v1162 = vsub.f32 %v738, 10.0
    %v1163 = vsub.f32 %v740, 10.0
    %v1164 = vsub.f32 %v742, 10.0
    %v1165 = vsub.f32 %v746, 10.0
    %v1166 = vsub.f32 %v748, 10.0
    %v1167 = vsub.f32 %v750, 10.0
    %v1168 = vsub.f32 %v752, 10.0
    %v1169 = vsub.f32 %v756, 10.0
    %v1170 = vsub.f32 %v758, 10.0
    %v1171 = vsub.f32 %v760, 10.0
    %v1172 = vsub.f32 %v762, 10.0
    %v1173 = vsub.f32 %v766, 10.0
    %v1174 = vsub.f32 %v768, 10.0
    %v1175 = vsub.f32 %v770, 10.0
    %v1176 = vsub.f32 %v772, 10.0
    %v1177 = vsub.f32 %v776, 10.0
    %v1178 = vsub.f32 %v778, 10.0
    %v1179 = vsub.f32 %v780, 10.0
    %v1180 = vsub.f32 %v782, 10.0
    %v1181 = vsub.f32 %v786, 10.0
    %v1182 = vsub.f32 %v788, 10.0
    %v1183 = vsub.f32 %v790, 10.0
    %v1184 = vsub.f32 %v792, 10.0
    %v1185 = vsub.f32 %v796, 10.0
    %v1186 = vsub.f32 %v798, 10.0
    %v1187 = vsub.f32 %v800, 10.0
    %v1188 = vsub.f32 %v802, 10.0
    %v1189 = vsub.f32 %v806, 10.0
    %v1190 = vsub.f32 %v808, 10.0
    %v1191 = vsub.f32 %v810, 10.0
    %v1192 = vsub.f32 %v812, 10.0
    %v1193 = vsub.f32 %v816, 10.0
    %v1194 = vsub.f32 %v818, 10.0
    %v1195 = vsub.f32 %v820, 10.0
    %v1196 = vsub.f32 %v822, 10.0
    %v1197 = vsub.f32 %v826, 10.0
    %v1198 = vsub.f32 %v828, 10.0
    %v1199 = vsub.f32 %v830, 10.0
    %v1200 = vsub.f32 %v832, 10.0
    %v1201 = vsub.f32 %v836, 10.0
    %v1202 = vsub.f32 %v838, 10.0
    %v1203 = vsub.f32 %v840, 10.0
    %v1204 = vsub.f32 %v842, 10.0
    %v1205 = vsub.f32 %v846, 10.0
    %v1206 = vsub.f32 %v848, 10.0
    %v1207 = vsub.f32 %v850, 10.0
    %v1208 = vsub.f32 %v852, 10.0
    %v1209 = vsub.f32 %v856, 10.0
    %v1210 = vsub.f32 %v858, 10.0
    %v1211 = vsub.f32 %v860, 10.0
    %v1212 = vsub.f32 %v862, 10.0
    %v1213 = vmul.f32 %v1149, 1.442695
    %v1214 = vpow.pop %v1213
    %v1215 = vmul.f32 %v1150, 1.442695
    %v1216 = vpow.pop %v1215
    %v1217 = vmul.f32 %v1151, 1.442695
    %v1218 = vpow.pop %v1217
    %v1219 = vmul.f32 %v1152, 1.442695
    %v1220 = vpow.pop %v1219
    %v1221 = vmul.f32 %v1153, 1.442695
    %v1222 = vpow.pop %v1221
    %v1223 = vmul.f32 %v1154, 1.442695
    %v1224 = vpow.pop %v1223
    %v1225 = vmul.f32 %v1155, 1.442695
    %v1226 = vpow.pop %v1225
    %v1227 = vmul.f32 %v1156, 1.442695
    %v1228 = vpow.pop %v1227
    %v1229 = vmul.f32 %v1157, 1.442695
    %v1230 = vpow.pop %v1229
    %v1231 = vmul.f32 %v1158, 1.442695
    %v1232 = vpow.pop %v1231
    %v1233 = vmul.f32 %v1159, 1.442695
    %v1234 = vpow.pop %v1233
    %v1235 = vmul.f32 %v1160, 1.442695
    %v1236 = vpow.pop %v1235
    %v1237 = vmul.f32 %v1161, 1.442695
    %v1238 = vpow.pop %v1237
    %v1239 = vmul.f32 %v1162, 1.442695
    %v1240 = vpow.pop %v1239
    %v1241 = vmul.f32 %v1163, 1.442695
    %v1242 = vpow.pop %v1241
    %v1243 = vmul.f32 %v1164, 1.442695
    %v1244 = vpow.pop %v1243
    %v1245 = vmul.f32 %v1165, 1.442695
    %v1246 = vpow.pop %v1245
    %v1247 = vmul.f32 %v1166, 1.442695
    %v1248 = vpow.pop %v1247
    %v1249 = vmul.f32 %v1167, 1.442695
    %v1250 = vpow.pop %v1249
    %v1251 = vmul.f32 %v1168, 1.442695
    %v1252 = vpow.pop %v1251
    %v1253 = vmul.f32 %v1169, 1.442695
    %v1254 = vpow.pop %v1253
    %v1255 = vmul.f32 %v1170, 1.442695
    %v1256 = vpow.pop %v1255
    %v1257 = vmul.f32 %v1171, 1.442695
    %v1258 = vpow.pop %v1257
    %v1259 = vmul.f32 %v1172, 1.442695
    %v1260 = vpow.pop %v1259
    %v1261 = vmul.f32 %v1173, 1.442695
    %v1262 = vpow.pop %v1261
    %v1263 = vmul.f32 %v1174, 1.442695
    %v1264 = vpow.pop %v1263
    %v1265 = vmul.f32 %v1175, 1.442695
    %v1266 = vpow.pop %v1265
    %v1267 = vmul.f32 %v1176, 1.442695
    %v1268 = vpow.pop %v1267
    %v1269 = vmul.f32 %v1177, 1.442695
    %v1270 = vpow.pop %v1269
    %v1271 = vmul.f32 %v1178, 1.442695
    %v1272 = vpow.pop %v1271
    %v1273 = vmul.f32 %v1179, 1.442695
    %v1274 = vpow.pop %v1273
    %v1275 = vmul.f32 %v1180, 1.442695
    %v1276 = vpow.pop %v1275
    %v1277 = vmul.f32 %v1181, 1.442695
    %v1278 = vpow.pop %v1277
    %v1279 = vmul.f32 %v1182, 1.442695
    %v1280 = vpow.pop %v1279
    %v1281 = vmul.f32 %v1183, 1.442695
    %v1282 = vpow.pop %v1281
    %v1283 = vmul.f32 %v1184, 1.442695
    %v1284 = vpow.pop %v1283
    %v1285 = vmul.f32 %v1185, 1.442695
    %v1286 = vpow.pop %v1285
    %v1287 = vmul.f32 %v1186, 1.442695
    %v1288 = vpow.pop %v1287
    %v1289 = vmul.f32 %v1187, 1.442695
    %v1290 = vpow.pop %v1289
    %v1291 = vmul.f32 %v1188, 1.442695
    %v1292 = vpow.pop %v1291
    %v1293 = vmul.f32 %v1189, 1.442695
    %v1294 = vpow.pop %v1293
    %v1295 = vmul.f32 %v1190, 1.442695
    %v1296 = vpow.pop %v1295
    %v1297 = vmul.f32 %v1191, 1.442695
    %v1298 = vpow.pop %v1297
    %v1299 = vmul.f32 %v1192, 1.442695
    %v1300 = vpow.pop %v1299
    %v1301 = vmul.f32 %v1193, 1.442695
    %v1302 = vpow.pop %v1301
    %v1303 = vmul.f32 %v1194, 1.442695
    %v1304 = vpow.pop %v1303
    %v1305 = vmul.f32 %v1195, 1.442695
    %v1306 = vpow.pop %v1305
    %v1307 = vmul.f32 %v1196, 1.442695
    %v1308 = vpow.pop %v1307
    %v1309 = vmul.f32 %v1197, 1.442695
    %v1310 = vpow.pop %v1309
    %v1311 = vmul.f32 %v1198, 1.442695
    %v1312 = vpow.pop %v1311
    %v1313 = vmul.f32 %v1199, 1.442695
    %v1314 = vpow.pop %v1313
    %v1315 = vmul.f32 %v1200, 1.442695
    %v1316 = vpow.pop %v1315
    %v1317 = vmul.f32 %v1201, 1.442695
    %v1318 = vpow.pop %v1317
    %v1319 = vmul.f32 %v1202, 1.442695
    %v1320 = vpow.pop %v1319
    %v1321 = vmul.f32 %v1203, 1.442695
    %v1322 = vpow.pop %v1321
    %v1323 = vmul.f32 %v1204, 1.442695
    %v1324 = vpow.pop %v1323
    %v1325 = vmul.f32 %v1205, 1.442695
    %v1326 = vpow.pop %v1325
    %v1327 = vmul.f32 %v1206, 1.442695
    %v1328 = vpow.pop %v1327
    %v1329 = vmul.f32 %v1207, 1.442695
    %v1330 = vpow.pop %v1329
    %v1331 = vmul.f32 %v1208, 1.442695
    %v1332 = vpow.pop %v1331
    %v1333 = vmul.f32 %v1209, 1.442695
    %v1334 = vpow.pop %v1333
    %v1335 = vmul.f32 %v1210, 1.442695
    %v1336 = vpow.pop %v1335
    %v1337 = vmul.f32 %v1211, 1.442695
    %v1338 = vpow.pop %v1337
    %v1339 = vmul.f32 %v1212, 1.442695
    %v1340 = vpow.pop %v1339
    %v1341 = vsel %vm1049, 1, 0
    %v1342 = vsel %vm1050, 1, 0
    %vm1343 = vcmp.eq.s32.totalorder %v1341, 1
    %vm1344 = vcmp.eq.s32.totalorder %v1342, 1
    %v1345 = vsel %vm1343, %v1214, 0.0
    %v1346 = vsel %vm1344, %v1216, 0.0
    %v1347 = vsel %vm1343, %v1218, 0.0
    %v1348 = vsel %vm1344, %v1220, 0.0
    %v1349 = vsel %vm1343, %v1222, 0.0
    %v1350 = vsel %vm1344, %v1224, 0.0
    %v1351 = vsel %vm1343, %v1226, 0.0
    %v1352 = vsel %vm1344, %v1228, 0.0
    %v1353 = vsel %vm1343, %v1230, 0.0
    %v1354 = vsel %vm1344, %v1232, 0.0
    %v1355 = vsel %vm1343, %v1234, 0.0
    %v1356 = vsel %vm1344, %v1236, 0.0
    %v1357 = vsel %vm1343, %v1238, 0.0
    %v1358 = vsel %vm1344, %v1240, 0.0
    %v1359 = vsel %vm1343, %v1242, 0.0
    %v1360 = vsel %vm1344, %v1244, 0.0
    %v1361 = vsel %vm1343, %v1246, 0.0
    %v1362 = vsel %vm1344, %v1248, 0.0
    %v1363 = vsel %vm1343, %v1250, 0.0
    %v1364 = vsel %vm1344, %v1252, 0.0
    %v1365 = vsel %vm1343, %v1254, 0.0
    %v1366 = vsel %vm1344, %v1256, 0.0
    %v1367 = vsel %vm1343, %v1258, 0.0
    %v1368 = vsel %vm1344, %v1260, 0.0
    %v1369 = vsel %vm1343, %v1262, 0.0
    %v1370 = vsel %vm1344, %v1264, 0.0
    %v1371 = vsel %vm1343, %v1266, 0.0
    %v1372 = vsel %vm1344, %v1268, 0.0
    %v1373 = vsel %vm1343, %v1270, 0.0
    %v1374 = vsel %vm1344, %v1272, 0.0
    %v1375 = vsel %vm1343, %v1274, 0.0
    %v1376 = vsel %vm1344, %v1276, 0.0
    %v1377 = vsel %vm1343, %v1278, 0.0
    %v1378 = vsel %vm1344, %v1280, 0.0
    %v1379 = vsel %vm1343, %v1282, 0.0
    %v1380 = vsel %vm1344, %v1284, 0.0
    %v1381 = vsel %vm1343, %v1286, 0.0
    %v1382 = vsel %vm1344, %v1288, 0.0
    %v1383 = vsel %vm1343, %v1290, 0.0
    %v1384 = vsel %vm1344, %v1292, 0.0
    %v1385 = vsel %vm1343, %v1294, 0.0
    %v1386 = vsel %vm1344, %v1296, 0.0
    %v1387 = vsel %vm1343, %v1298, 0.0
    %v1388 = vsel %vm1344, %v1300, 0.0
    %v1389 = vsel %vm1343, %v1302, 0.0
    %v1390 = vsel %vm1344, %v1304, 0.0
    %v1391 = vsel %vm1343, %v1306, 0.0
    %v1392 = vsel %vm1344, %v1308, 0.0
    %v1393 = vsel %vm1343, %v1310, 0.0
    %v1394 = vsel %vm1344, %v1312, 0.0
    %v1395 = vsel %vm1343, %v1314, 0.0
    %v1396 = vsel %vm1344, %v1316, 0.0
    %v1397 = vsel %vm1343, %v1318, 0.0
    %v1398 = vsel %vm1344, %v1320, 0.0
    %v1399 = vsel %vm1343, %v1322, 0.0
    %v1400 = vsel %vm1344, %v1324, 0.0
    %v1401 = vsel %vm1343, %v1326, 0.0
    %v1402 = vsel %vm1344, %v1328, 0.0
    %v1403 = vsel %vm1343, %v1330, 0.0
    %v1404 = vsel %vm1344, %v1332, 0.0
    %v1405 = vsel %vm1343, %v1334, 0.0
    %v1406 = vsel %vm1344, %v1336, 0.0
    %v1407 = vsel %vm1343, %v1338, 0.0
    %v1408 = vsel %vm1344, %v1340, 0.0
    %v1409 = vadd.f32 %v1345, %v1346
    %1410 = vadd.xlane.f32.xlu0 %v1409
    %v1411 = vpop.xlane.xlu0 %1410
    %v1412 = vadd.f32 %v1347, %v1348
    %1413 = vadd.xlane.f32.xlu0 %v1412
    %v1414 = vpop.xlane.xlu0 %1413
    %v1415 = vadd.f32 %v1349, %v1350
    %1416 = vadd.xlane.f32.xlu0 %v1415
    %v1417 = vpop.xlane.xlu0 %1416
    %v1418 = vadd.f32 %v1351, %v1352
    %1419 = vadd.xlane.f32.xlu0 %v1418
    %v1420 = vpop.xlane.xlu0 %1419
    %v1421 = vadd.f32 %v1353, %v1354
    %1422 = vadd.xlane.f32.xlu0 %v1421
    %v1423 = vpop.xlane.xlu0 %1422
    %v1424 = vadd.f32 %v1355, %v1356
    %1425 = vadd.xlane.f32.xlu0 %v1424
    %v1426 = vpop.xlane.xlu0 %1425
    %v1427 = vadd.f32 %v1357, %v1358
    %1428 = vadd.xlane.f32.xlu0 %v1427
    %v1429 = vpop.xlane.xlu0 %1428
    %v1430 = vadd.f32 %v1359, %v1360
    %1431 = vadd.xlane.f32.xlu0 %v1430
    %v1432 = vpop.xlane.xlu0 %1431
    %v1433 = vadd.f32 %v1361, %v1362
    %1434 = vadd.xlane.f32.xlu0 %v1433
    %v1435 = vpop.xlane.xlu0 %1434
    %v1436 = vadd.f32 %v1363, %v1364
    %1437 = vadd.xlane.f32.xlu0 %v1436
    %v1438 = vpop.xlane.xlu0 %1437
    %v1439 = vadd.f32 %v1365, %v1366
    %1440 = vadd.xlane.f32.xlu0 %v1439
    %v1441 = vpop.xlane.xlu0 %1440
    %v1442 = vadd.f32 %v1367, %v1368
    %1443 = vadd.xlane.f32.xlu0 %v1442
    %v1444 = vpop.xlane.xlu0 %1443
    %v1445 = vadd.f32 %v1369, %v1370
    %1446 = vadd.xlane.f32.xlu0 %v1445
    %v1447 = vpop.xlane.xlu0 %1446
    %v1448 = vadd.f32 %v1371, %v1372
    %1449 = vadd.xlane.f32.xlu0 %v1448
    %v1450 = vpop.xlane.xlu0 %1449
    %v1451 = vadd.f32 %v1373, %v1374
    %1452 = vadd.xlane.f32.xlu0 %v1451
    %v1453 = vpop.xlane.xlu0 %1452
    %v1454 = vadd.f32 %v1375, %v1376
    %1455 = vadd.xlane.f32.xlu0 %v1454
    %v1456 = vpop.xlane.xlu0 %1455
    %v1457 = vadd.f32 %v1377, %v1378
    %1458 = vadd.xlane.f32.xlu0 %v1457
    %v1459 = vpop.xlane.xlu0 %1458
    %v1460 = vadd.f32 %v1379, %v1380
    %1461 = vadd.xlane.f32.xlu0 %v1460
    %v1462 = vpop.xlane.xlu0 %1461
    %v1463 = vadd.f32 %v1381, %v1382
    %1464 = vadd.xlane.f32.xlu0 %v1463
    %v1465 = vpop.xlane.xlu0 %1464
    %v1466 = vadd.f32 %v1383, %v1384
    %1467 = vadd.xlane.f32.xlu0 %v1466
    %v1468 = vpop.xlane.xlu0 %1467
    %v1469 = vadd.f32 %v1385, %v1386
    %1470 = vadd.xlane.f32.xlu0 %v1469
    %v1471 = vpop.xlane.xlu0 %1470
    %v1472 = vadd.f32 %v1387, %v1388
    %1473 = vadd.xlane.f32.xlu0 %v1472
    %v1474 = vpop.xlane.xlu0 %1473
    %v1475 = vadd.f32 %v1389, %v1390
    %1476 = vadd.xlane.f32.xlu0 %v1475
    %v1477 = vpop.xlane.xlu0 %1476
    %v1478 = vadd.f32 %v1391, %v1392
    %1479 = vadd.xlane.f32.xlu0 %v1478
    %v1480 = vpop.xlane.xlu0 %1479
    %v1481 = vadd.f32 %v1393, %v1394
    %1482 = vadd.xlane.f32.xlu0 %v1481
    %v1483 = vpop.xlane.xlu0 %1482
    %v1484 = vadd.f32 %v1395, %v1396
    %1485 = vadd.xlane.f32.xlu0 %v1484
    %v1486 = vpop.xlane.xlu0 %1485
    %v1487 = vadd.f32 %v1397, %v1398
    %1488 = vadd.xlane.f32.xlu0 %v1487
    %v1489 = vpop.xlane.xlu0 %1488
    %v1490 = vadd.f32 %v1399, %v1400
    %1491 = vadd.xlane.f32.xlu0 %v1490
    %v1492 = vpop.xlane.xlu0 %1491
    %v1493 = vadd.f32 %v1401, %v1402
    %1494 = vadd.xlane.f32.xlu0 %v1493
    %v1495 = vpop.xlane.xlu0 %1494
    %v1496 = vadd.f32 %v1403, %v1404
    %1497 = vadd.xlane.f32.xlu0 %v1496
    %v1498 = vpop.xlane.xlu0 %1497
    %v1499 = vadd.f32 %v1405, %v1406
    %1500 = vadd.xlane.f32.xlu0 %v1499
    %v1501 = vpop.xlane.xlu0 %1500
    %v1502 = vadd.f32 %v1407, %v1408
    %1503 = vadd.xlane.f32.xlu0 %v1502
    %v1504 = vpop.xlane.xlu0 %1503
    %v1505 = vlog2.pop %v1411
    %v1506 = vmul.f32 %v1505, 0.6931472
    %v1507 = vlog2.pop %v1414
    %v1508 = vmul.f32 %v1507, 0.6931472
    %v1509 = vlog2.pop %v1417
    %v1510 = vmul.f32 %v1509, 0.6931472
    %v1511 = vlog2.pop %v1420
    %v1512 = vmul.f32 %v1511, 0.6931472
    %v1513 = vlog2.pop %v1423
    %v1514 = vmul.f32 %v1513, 0.6931472
    %v1515 = vlog2.pop %v1426
    %v1516 = vmul.f32 %v1515, 0.6931472
    %v1517 = vlog2.pop %v1429
    %v1518 = vmul.f32 %v1517, 0.6931472
    %v1519 = vlog2.pop %v1432
    %v1520 = vmul.f32 %v1519, 0.6931472
    %v1521 = vlog2.pop %v1435
    %v1522 = vmul.f32 %v1521, 0.6931472
    %v1523 = vlog2.pop %v1438
    %v1524 = vmul.f32 %v1523, 0.6931472
    %v1525 = vlog2.pop %v1441
    %v1526 = vmul.f32 %v1525, 0.6931472
    %v1527 = vlog2.pop %v1444
    %v1528 = vmul.f32 %v1527, 0.6931472
    %v1529 = vlog2.pop %v1447
    %v1530 = vmul.f32 %v1529, 0.6931472
    %v1531 = vlog2.pop %v1450
    %v1532 = vmul.f32 %v1531, 0.6931472
    %v1533 = vlog2.pop %v1453
    %v1534 = vmul.f32 %v1533, 0.6931472
    %v1535 = vlog2.pop %v1456
    %v1536 = vmul.f32 %v1535, 0.6931472
    %v1537 = vlog2.pop %v1459
    %v1538 = vmul.f32 %v1537, 0.6931472
    %v1539 = vlog2.pop %v1462
    %v1540 = vmul.f32 %v1539, 0.6931472
    %v1541 = vlog2.pop %v1465
    %v1542 = vmul.f32 %v1541, 0.6931472
    %v1543 = vlog2.pop %v1468
    %v1544 = vmul.f32 %v1543, 0.6931472
    %v1545 = vlog2.pop %v1471
    %v1546 = vmul.f32 %v1545, 0.6931472
    %v1547 = vlog2.pop %v1474
    %v1548 = vmul.f32 %v1547, 0.6931472
    %v1549 = vlog2.pop %v1477
    %v1550 = vmul.f32 %v1549, 0.6931472
    %v1551 = vlog2.pop %v1480
    %v1552 = vmul.f32 %v1551, 0.6931472
    %v1553 = vlog2.pop %v1483
    %v1554 = vmul.f32 %v1553, 0.6931472
    %v1555 = vlog2.pop %v1486
    %v1556 = vmul.f32 %v1555, 0.6931472
    %v1557 = vlog2.pop %v1489
    %v1558 = vmul.f32 %v1557, 0.6931472
    %v1559 = vlog2.pop %v1492
    %v1560 = vmul.f32 %v1559, 0.6931472
    %v1561 = vlog2.pop %v1495
    %v1562 = vmul.f32 %v1561, 0.6931472
    %v1563 = vlog2.pop %v1498
    %v1564 = vmul.f32 %v1563, 0.6931472
    %v1565 = vlog2.pop %v1501
    %v1566 = vmul.f32 %v1565, 0.6931472
    %v1567 = vlog2.pop %v1504
    %v1568 = vmul.f32 %v1567, 0.6931472
    %v1569 = vadd.f32 %v1506, 10.0
    %v1570 = vadd.f32 %v1508, 10.0
    %v1571 = vadd.f32 %v1510, 10.0
    %v1572 = vadd.f32 %v1512, 10.0
    %v1573 = vadd.f32 %v1514, 10.0
    %v1574 = vadd.f32 %v1516, 10.0
    %v1575 = vadd.f32 %v1518, 10.0
    %v1576 = vadd.f32 %v1520, 10.0
    %v1577 = vadd.f32 %v1522, 10.0
    %v1578 = vadd.f32 %v1524, 10.0
    %v1579 = vadd.f32 %v1526, 10.0
    %v1580 = vadd.f32 %v1528, 10.0
    %v1581 = vadd.f32 %v1530, 10.0
    %v1582 = vadd.f32 %v1532, 10.0
    %v1583 = vadd.f32 %v1534, 10.0
    %v1584 = vadd.f32 %v1536, 10.0
    %v1585 = vadd.f32 %v1538, 10.0
    %v1586 = vadd.f32 %v1540, 10.0
    %v1587 = vadd.f32 %v1542, 10.0
    %v1588 = vadd.f32 %v1544, 10.0
    %v1589 = vadd.f32 %v1546, 10.0
    %v1590 = vadd.f32 %v1548, 10.0
    %v1591 = vadd.f32 %v1550, 10.0
    %v1592 = vadd.f32 %v1552, 10.0
    %v1593 = vadd.f32 %v1554, 10.0
    %v1594 = vadd.f32 %v1556, 10.0
    %v1595 = vadd.f32 %v1558, 10.0
    %v1596 = vadd.f32 %v1560, 10.0
    %v1597 = vadd.f32 %v1562, 10.0
    %v1598 = vadd.f32 %v1564, 10.0
    %v1599 = vadd.f32 %v1566, 10.0
    %v1600 = vadd.f32 %v1568, 10.0
    %v1601 = vsel %vm1117, 1, 0
    %v1602 = vsel %vm1118, 1, 0
    %v1603 = vsel %vm1119, 1, 0
    %v1604 = vsel %vm1120, 1, 0
    %v1605 = vsel %vm1121, 1, 0
    %v1606 = vsel %vm1122, 1, 0
    %v1607 = vsel %vm1123, 1, 0
    %v1608 = vsel %vm1124, 1, 0
    %v1609 = vsel %vm1125, 1, 0
    %v1610 = vsel %vm1126, 1, 0
    %v1611 = vsel %vm1127, 1, 0
    %v1612 = vsel %vm1128, 1, 0
    %v1613 = vsel %vm1129, 1, 0
    %v1614 = vsel %vm1130, 1, 0
    %v1615 = vsel %vm1131, 1, 0
    %v1616 = vsel %vm1132, 1, 0
    %v1617 = vsel %vm1133, 1, 0
    %v1618 = vsel %vm1134, 1, 0
    %v1619 = vsel %vm1135, 1, 0
    %v1620 = vsel %vm1136, 1, 0
    %v1621 = vsel %vm1137, 1, 0
    %v1622 = vsel %vm1138, 1, 0
    %v1623 = vsel %vm1139, 1, 0
    %v1624 = vsel %vm1140, 1, 0
    %v1625 = vsel %vm1141, 1, 0
    %v1626 = vsel %vm1142, 1, 0
    %v1627 = vsel %vm1143, 1, 0
    %v1628 = vsel %vm1144, 1, 0
    %v1629 = vsel %vm1145, 1, 0
    %v1630 = vsel %vm1146, 1, 0
    %v1631 = vsel %vm1147, 1, 0
    %v1632 = vsel %vm1148, 1, 0
    %vm1633 = vcmp.eq.s32.totalorder %v1601, 1
    %vm1634 = vcmp.eq.s32.totalorder %v1602, 1
    %vm1635 = vcmp.eq.s32.totalorder %v1603, 1
    %vm1636 = vcmp.eq.s32.totalorder %v1604, 1
    %vm1637 = vcmp.eq.s32.totalorder %v1605, 1
    %vm1638 = vcmp.eq.s32.totalorder %v1606, 1
    %vm1639 = vcmp.eq.s32.totalorder %v1607, 1
    %vm1640 = vcmp.eq.s32.totalorder %v1608, 1
    %vm1641 = vcmp.eq.s32.totalorder %v1609, 1
    %vm1642 = vcmp.eq.s32.totalorder %v1610, 1
    %vm1643 = vcmp.eq.s32.totalorder %v1611, 1
    %vm1644 = vcmp.eq.s32.totalorder %v1612, 1
    %vm1645 = vcmp.eq.s32.totalorder %v1613, 1
    %vm1646 = vcmp.eq.s32.totalorder %v1614, 1
    %vm1647 = vcmp.eq.s32.totalorder %v1615, 1
    %vm1648 = vcmp.eq.s32.totalorder %v1616, 1
    %vm1649 = vcmp.eq.s32.totalorder %v1617, 1
    %vm1650 = vcmp.eq.s32.totalorder %v1618, 1
    %vm1651 = vcmp.eq.s32.totalorder %v1619, 1
    %vm1652 = vcmp.eq.s32.totalorder %v1620, 1
    %vm1653 = vcmp.eq.s32.totalorder %v1621, 1
    %vm1654 = vcmp.eq.s32.totalorder %v1622, 1
    %vm1655 = vcmp.eq.s32.totalorder %v1623, 1
    %vm1656 = vcmp.eq.s32.totalorder %v1624, 1
    %vm1657 = vcmp.eq.s32.totalorder %v1625, 1
    %vm1658 = vcmp.eq.s32.totalorder %v1626, 1
    %vm1659 = vcmp.eq.s32.totalorder %v1627, 1
    %vm1660 = vcmp.eq.s32.totalorder %v1628, 1
    %vm1661 = vcmp.eq.s32.totalorder %v1629, 1
    %vm1662 = vcmp.eq.s32.totalorder %v1630, 1
    %vm1663 = vcmp.eq.s32.totalorder %v1631, 1
    %vm1664 = vcmp.eq.s32.totalorder %v1632, 1
    %v1665 = vsel %vm1633, %v1214, 0.0
    %v1666 = vsel %vm1633, %v1216, 0.0
    %v1667 = vsel %vm1634, %v1218, 0.0
    %v1668 = vsel %vm1634, %v1220, 0.0
    %v1669 = vsel %vm1635, %v1222, 0.0
    %v1670 = vsel %vm1635, %v1224, 0.0
    %v1671 = vsel %vm1636, %v1226, 0.0
    %v1672 = vsel %vm1636, %v1228, 0.0
    %v1673 = vsel %vm1637, %v1230, 0.0
    %v1674 = vsel %vm1637, %v1232, 0.0
    %v1675 = vsel %vm1638, %v1234, 0.0
    %v1676 = vsel %vm1638, %v1236, 0.0
    %v1677 = vsel %vm1639, %v1238, 0.0
    %v1678 = vsel %vm1639, %v1240, 0.0
    %v1679 = vsel %vm1640, %v1242, 0.0
    %v1680 = vsel %vm1640, %v1244, 0.0
    %v1681 = vsel %vm1641, %v1246, 0.0
    %v1682 = vsel %vm1641, %v1248, 0.0
    %v1683 = vsel %vm1642, %v1250, 0.0
    %v1684 = vsel %vm1642, %v1252, 0.0
    %v1685 = vsel %vm1643, %v1254, 0.0
    %v1686 = vsel %vm1643, %v1256, 0.0
    %v1687 = vsel %vm1644, %v1258, 0.0
    %v1688 = vsel %vm1644, %v1260, 0.0
    %v1689 = vsel %vm1645, %v1262, 0.0
    %v1690 = vsel %vm1645, %v1264, 0.0
    %v1691 = vsel %vm1646, %v1266, 0.0
    %v1692 = vsel %vm1646, %v1268, 0.0
    %v1693 = vsel %vm1647, %v1270, 0.0
    %v1694 = vsel %vm1647, %v1272, 0.0
    %v1695 = vsel %vm1648, %v1274, 0.0
    %v1696 = vsel %vm1648, %v1276, 0.0
    %v1697 = vsel %vm1649, %v1278, 0.0
    %v1698 = vsel %vm1649, %v1280, 0.0
    %v1699 = vsel %vm1650, %v1282, 0.0
    %v1700 = vsel %vm1650, %v1284, 0.0
    %v1701 = vsel %vm1651, %v1286, 0.0
    %v1702 = vsel %vm1651, %v1288, 0.0
    %v1703 = vsel %vm1652, %v1290, 0.0
    %v1704 = vsel %vm1652, %v1292, 0.0
    %v1705 = vsel %vm1653, %v1294, 0.0
    %v1706 = vsel %vm1653, %v1296, 0.0
    %v1707 = vsel %vm1654, %v1298, 0.0
    %v1708 = vsel %vm1654, %v1300, 0.0
    %v1709 = vsel %vm1655, %v1302, 0.0
    %v1710 = vsel %vm1655, %v1304, 0.0
    %v1711 = vsel %vm1656, %v1306, 0.0
    %v1712 = vsel %vm1656, %v1308, 0.0
    %v1713 = vsel %vm1657, %v1310, 0.0
    %v1714 = vsel %vm1657, %v1312, 0.0
    %v1715 = vsel %vm1658, %v1314, 0.0
    %v1716 = vsel %vm1658, %v1316, 0.0
    %v1717 = vsel %vm1659, %v1318, 0.0
    %v1718 = vsel %vm1659, %v1320, 0.0
    %v1719 = vsel %vm1660, %v1322, 0.0
    %v1720 = vsel %vm1660, %v1324, 0.0
    %v1721 = vsel %vm1661, %v1326, 0.0
    %v1722 = vsel %vm1661, %v1328, 0.0
    %v1723 = vsel %vm1662, %v1330, 0.0
    %v1724 = vsel %vm1662, %v1332, 0.0
    %v1725 = vsel %vm1663, %v1334, 0.0
    %v1726 = vsel %vm1663, %v1336, 0.0
    %v1727 = vsel %vm1664, %v1338, 0.0
    %v1728 = vsel %vm1664, %v1340, 0.0
    %v1729 = vld [vmem:[#allocation8] sm:$0x3]
    %v1730 = vadd.f32 %v1665, %v1667
    %v1731 = vadd.f32 %v1730, %v1669
    %v1732 = vadd.f32 %v1731, %v1671
    %v1733 = vadd.f32 %v1732, %v1673
    %v1734 = vadd.f32 %v1733, %v1675
    %v1735 = vadd.f32 %v1734, %v1677
    %v1736 = vadd.f32 %v1735, %v1679
    %v1737 = vadd.f32 %v1736, %v1681
    %v1738 = vadd.f32 %v1737, %v1683
    %v1739 = vadd.f32 %v1738, %v1685
    %v1740 = vadd.f32 %v1739, %v1687
    %v1741 = vadd.f32 %v1740, %v1689
    %v1742 = vadd.f32 %v1741, %v1691
    %v1743 = vadd.f32 %v1742, %v1693
    %v1744 = vadd.f32 %v1743, %v1695
    %v1745 = vadd.f32 %v1744, %v1697
    %v1746 = vadd.f32 %v1745, %v1699
    %v1747 = vadd.f32 %v1746, %v1701
    %v1748 = vadd.f32 %v1747, %v1703
    %v1749 = vadd.f32 %v1748, %v1705
    %v1750 = vadd.f32 %v1749, %v1707
    %v1751 = vadd.f32 %v1750, %v1709
    %v1752 = vadd.f32 %v1751, %v1711
    %v1753 = vadd.f32 %v1752, %v1713
    %v1754 = vadd.f32 %v1753, %v1715
    %v1755 = vadd.f32 %v1754, %v1717
    %v1756 = vadd.f32 %v1755, %v1719
    %v1757 = vadd.f32 %v1756, %v1721
    %v1758 = vadd.f32 %v1757, %v1723
    %v1759 = vadd.f32 %v1758, %v1725
    %v1760 = vadd.f32 %v1759, %v1727
    %v1761 = vrot.slane %v1760, 4
    %v1762 = vadd.f32 %v1760, %v1761
    %v1763 = vrot.slane %v1762, 2
    %v1764 = vadd.f32 %v1762, %v1763
    %v1765 = vrot.slane %v1764, 1
    %v1766 = vadd.f32 %v1764, %v1765
    %v1767 = vadd.f32 %v1666, %v1668
    %v1768 = vadd.f32 %v1767, %v1670
    %v1769 = vadd.f32 %v1768, %v1672
    %v1770 = vadd.f32 %v1769, %v1674
    %v1771 = vadd.f32 %v1770, %v1676
    %v1772 = vadd.f32 %v1771, %v1678
    %v1773 = vadd.f32 %v1772, %v1680
    %v1774 = vadd.f32 %v1773, %v1682
    %v1775 = vadd.f32 %v1774, %v1684
    %v1776 = vadd.f32 %v1775, %v1686
    %v1777 = vadd.f32 %v1776, %v1688
    %v1778 = vadd.f32 %v1777, %v1690
    %v1779 = vadd.f32 %v1778, %v1692
    %v1780 = vadd.f32 %v1779, %v1694
    %v1781 = vadd.f32 %v1780, %v1696
    %v1782 = vadd.f32 %v1781, %v1698
    %v1783 = vadd.f32 %v1782, %v1700
    %v1784 = vadd.f32 %v1783, %v1702
    %v1785 = vadd.f32 %v1784, %v1704
    %v1786 = vadd.f32 %v1785, %v1706
    %v1787 = vadd.f32 %v1786, %v1708
    %v1788 = vadd.f32 %v1787, %v1710
    %v1789 = vadd.f32 %v1788, %v1712
    %v1790 = vadd.f32 %v1789, %v1714
    %v1791 = vadd.f32 %v1790, %v1716
    %v1792 = vadd.f32 %v1791, %v1718
    %v1793 = vadd.f32 %v1792, %v1720
    %v1794 = vadd.f32 %v1793, %v1722
    %v1795 = vadd.f32 %v1794, %v1724
    %v1796 = vadd.f32 %v1795, %v1726
    %v1797 = vadd.f32 %v1796, %v1728
    %v1798 = vrot.slane %v1797, 4
    %v1799 = vadd.f32 %v1797, %v1798
    %v1800 = vrot.slane %v1799, 2
    %v1801 = vadd.f32 %v1799, %v1800
    %v1802 = vrot.slane %v1801, 1
    %v1803 = vadd.f32 %v1801, %v1802
    %v1806 = vcombine.low %v1766, %v1803
    %v1808 = vunpack.c.l.s4 1966171168
    %v1809 = vunpack.c.0.s8 %v1808
    %v1810 = vlaneseq
    %v1811 = vshrl.u32 %v1810, 7
    %v1812 = vsub.s32 %v1809, %v1811
    %v1813 = vrot.slane %v1806, %v1812
    %v1815 = vunpack.c.l.s4 1966171168
    %v1816 = vunpack.c.0.s8 %v1815
    %v1817 = vlaneseq
    %v1818 = vshrl.u32 %v1817, 7
    %v1819 = vsub.s32 %v1816, %v1818
    %v1820 = vrot.slane %v1813, %v1819
    %v1822 = vadd.f32 %v1729, %v1820
    %v1823 = vlaneseq
    %vm1824 = vcmp.ge.s32.totalorder %v1823, 0
    %vm1825 = vcmp.lt.s32.totalorder %v1823, 256
    %vm1826 = vmand %vm1824, %vm1825
    %1827 = vst.msk [vmem:[#allocation8] sm:$0x3] %vm1826, %v1822
    %v1828 = vld [vmem:[#allocation9] sm:$0x1]
    %v1829 = vsub.f32 %v1569, %v983
    %v1830 = vsub.f32 %v1570, %v985
    %v1831 = vsub.f32 %v1571, %v987
    %v1832 = vsub.f32 %v1572, %v989
    %v1833 = vsub.f32 %v1573, %v991
    %v1834 = vsub.f32 %v1574, %v993
    %v1835 = vsub.f32 %v1575, %v995
    %v1836 = vsub.f32 %v1576, %v997
    %v1837 = vsub.f32 %v1577, %v999
    %v1838 = vsub.f32 %v1578, %v1001
    %v1839 = vsub.f32 %v1579, %v1003
    %v1840 = vsub.f32 %v1580, %v1005
    %v1841 = vsub.f32 %v1581, %v1007
    %v1842 = vsub.f32 %v1582, %v1009
    %v1843 = vsub.f32 %v1583, %v1011
    %v1844 = vsub.f32 %v1584, %v1013
    %v1845 = vsub.f32 %v1585, %v1015
    %v1846 = vsub.f32 %v1586, %v1017
    %v1847 = vsub.f32 %v1587, %v1019
    %v1848 = vsub.f32 %v1588, %v1021
    %v1849 = vsub.f32 %v1589, %v1023
    %v1850 = vsub.f32 %v1590, %v1025
    %v1851 = vsub.f32 %v1591, %v1027
    %v1852 = vsub.f32 %v1592, %v1029
    %v1853 = vsub.f32 %v1593, %v1031
    %v1854 = vsub.f32 %v1594, %v1033
    %v1855 = vsub.f32 %v1595, %v1035
    %v1856 = vsub.f32 %v1596, %v1037
    %v1857 = vsub.f32 %v1597, %v1039
    %v1858 = vsub.f32 %v1598, %v1041
    %v1859 = vsub.f32 %v1599, %v1043
    %v1860 = vsub.f32 %v1600, %v1045
    %v1861 = vsel %vm1117, %v1829, 0.0
    %v1862 = vsel %vm1118, %v1830, 0.0
    %v1863 = vsel %vm1119, %v1831, 0.0
    %v1864 = vsel %vm1120, %v1832, 0.0
    %v1865 = vsel %vm1121, %v1833, 0.0
    %v1866 = vsel %vm1122, %v1834, 0.0
    %v1867 = vsel %vm1123, %v1835, 0.0
    %v1868 = vsel %vm1124, %v1836, 0.0
    %v1869 = vsel %vm1125, %v1837, 0.0
    %v1870 = vsel %vm1126, %v1838, 0.0
    %v1871 = vsel %vm1127, %v1839, 0.0
    %v1872 = vsel %vm1128, %v1840, 0.0
    %v1873 = vsel %vm1129, %v1841, 0.0
    %v1874 = vsel %vm1130, %v1842, 0.0
    %v1875 = vsel %vm1131, %v1843, 0.0
    %v1876 = vsel %vm1132, %v1844, 0.0
    %v1877 = vsel %vm1133, %v1845, 0.0
    %v1878 = vsel %vm1134, %v1846, 0.0
    %v1879 = vsel %vm1135, %v1847, 0.0
    %v1880 = vsel %vm1136, %v1848, 0.0
    %v1881 = vsel %vm1137, %v1849, 0.0
    %v1882 = vsel %vm1138, %v1850, 0.0
    %v1883 = vsel %vm1139, %v1851, 0.0
    %v1884 = vsel %vm1140, %v1852, 0.0
    %v1885 = vsel %vm1141, %v1853, 0.0
    %v1886 = vsel %vm1142, %v1854, 0.0
    %v1887 = vsel %vm1143, %v1855, 0.0
    %v1888 = vsel %vm1144, %v1856, 0.0
    %v1889 = vsel %vm1145, %v1857, 0.0
    %v1890 = vsel %vm1146, %v1858, 0.0
    %v1891 = vsel %vm1147, %v1859, 0.0
    %v1892 = vsel %vm1148, %v1860, 0.0
    %v1893 = vadd.f32 %v1861, %v1862
    %v1894 = vadd.f32 %v1893, %v1863
    %v1895 = vadd.f32 %v1894, %v1864
    %v1896 = vadd.f32 %v1895, %v1865
    %v1897 = vadd.f32 %v1896, %v1866
    %v1898 = vadd.f32 %v1897, %v1867
    %v1899 = vadd.f32 %v1898, %v1868
    %v1900 = vadd.f32 %v1899, %v1869
    %v1901 = vadd.f32 %v1900, %v1870
    %v1902 = vadd.f32 %v1901, %v1871
    %v1903 = vadd.f32 %v1902, %v1872
    %v1904 = vadd.f32 %v1903, %v1873
    %v1905 = vadd.f32 %v1904, %v1874
    %v1906 = vadd.f32 %v1905, %v1875
    %v1907 = vadd.f32 %v1906, %v1876
    %v1908 = vadd.f32 %v1907, %v1877
    %v1909 = vadd.f32 %v1908, %v1878
    %v1910 = vadd.f32 %v1909, %v1879
    %v1911 = vadd.f32 %v1910, %v1880
    %v1912 = vadd.f32 %v1911, %v1881
    %v1913 = vadd.f32 %v1912, %v1882
    %v1914 = vadd.f32 %v1913, %v1883
    %v1915 = vadd.f32 %v1914, %v1884
    %v1916 = vadd.f32 %v1915, %v1885
    %v1917 = vadd.f32 %v1916, %v1886
    %v1918 = vadd.f32 %v1917, %v1887
    %v1919 = vadd.f32 %v1918, %v1888
    %v1920 = vadd.f32 %v1919, %v1889
    %v1921 = vadd.f32 %v1920, %v1890
    %v1922 = vadd.f32 %v1921, %v1891
    %v1923 = vadd.f32 %v1922, %v1892
    %v1924 = vrot.slane %v1923, 4
    %v1925 = vadd.f32 %v1923, %v1924
    %v1926 = vrot.slane %v1925, 2
    %v1927 = vadd.f32 %v1925, %v1926
    %v1928 = vrot.slane %v1927, 1
    %v1929 = vadd.f32 %v1927, %v1928
    %v1930 = vadd.f32 %v1828, %v1929
    %vm1931 = vcmask 0
    %1932 = vst.msk [vmem:[#allocation9] sm:$0x1] %vm1931, %v1930
    %v1933 = vld [vmem:[#allocation11] sm:$0x1]
    %v1934 = vsel %vm1117, %v983, 0.0
    %v1935 = vsel %vm1118, %v985, 0.0
    %v1936 = vsel %vm1119, %v987, 0.0
    %v1937 = vsel %vm1120, %v989, 0.0
    %v1938 = vsel %vm1121, %v991, 0.0
    %v1939 = vsel %vm1122, %v993, 0.0
    %v1940 = vsel %vm1123, %v995, 0.0
    %v1941 = vsel %vm1124, %v997, 0.0
    %v1942 = vsel %vm1125, %v999, 0.0
    %v1943 = vsel %vm1126, %v1001, 0.0
    %v1944 = vsel %vm1127, %v1003, 0.0
    %v1945 = vsel %vm1128, %v1005, 0.0
    %v1946 = vsel %vm1129, %v1007, 0.0
    %v1947 = vsel %vm1130, %v1009, 0.0
    %v1948 = vsel %vm1131, %v1011, 0.0
    %v1949 = vsel %vm1132, %v1013, 0.0
    %v1950 = vsel %vm1133, %v1015, 0.0
    %v1951 = vsel %vm1134, %v1017, 0.0
    %v1952 = vsel %vm1135, %v1019, 0.0
    %v1953 = vsel %vm1136, %v1021, 0.0
    %v1954 = vsel %vm1137, %v1023, 0.0
    %v1955 = vsel %vm1138, %v1025, 0.0
    %v1956 = vsel %vm1139, %v1027, 0.0
    %v1957 = vsel %vm1140, %v1029, 0.0
    %v1958 = vsel %vm1141, %v1031, 0.0
    %v1959 = vsel %vm1142, %v1033, 0.0
    %v1960 = vsel %vm1143, %v1035, 0.0
    %v1961 = vsel %vm1144, %v1037, 0.0
    %v1962 = vsel %vm1145, %v1039, 0.0
    %v1963 = vsel %vm1146, %v1041, 0.0
    %v1964 = vsel %vm1147, %v1043, 0.0
    %v1965 = vsel %vm1148, %v1045, 0.0
    %v1966 = vadd.f32 %v1934, %v1935
    %v1967 = vadd.f32 %v1966, %v1936
    %v1968 = vadd.f32 %v1967, %v1937
    %v1969 = vadd.f32 %v1968, %v1938
    %v1970 = vadd.f32 %v1969, %v1939
    %v1971 = vadd.f32 %v1970, %v1940
    %v1972 = vadd.f32 %v1971, %v1941
    %v1973 = vadd.f32 %v1972, %v1942
    %v1974 = vadd.f32 %v1973, %v1943
    %v1975 = vadd.f32 %v1974, %v1944
    %v1976 = vadd.f32 %v1975, %v1945
    %v1977 = vadd.f32 %v1976, %v1946
    %v1978 = vadd.f32 %v1977, %v1947
    %v1979 = vadd.f32 %v1978, %v1948
    %v1980 = vadd.f32 %v1979, %v1949
    %v1981 = vadd.f32 %v1980, %v1950
    %v1982 = vadd.f32 %v1981, %v1951
    %v1983 = vadd.f32 %v1982, %v1952
    %v1984 = vadd.f32 %v1983, %v1953
    %v1985 = vadd.f32 %v1984, %v1954
    %v1986 = vadd.f32 %v1985, %v1955
    %v1987 = vadd.f32 %v1986, %v1956
    %v1988 = vadd.f32 %v1987, %v1957
    %v1989 = vadd.f32 %v1988, %v1958
    %v1990 = vadd.f32 %v1989, %v1959
    %v1991 = vadd.f32 %v1990, %v1960
    %v1992 = vadd.f32 %v1991, %v1961
    %v1993 = vadd.f32 %v1992, %v1962
    %v1994 = vadd.f32 %v1993, %v1963
    %v1995 = vadd.f32 %v1994, %v1964
    %v1996 = vadd.f32 %v1995, %v1965
    %v1997 = vrot.slane %v1996, 4
    %v1998 = vadd.f32 %v1996, %v1997
    %v1999 = vrot.slane %v1998, 2
    %v2000 = vadd.f32 %v1998, %v1999
    %v2001 = vrot.slane %v2000, 1
    %v2002 = vadd.f32 %v2000, %v2001
    %v2003 = vadd.f32 %v1933, %v2002
    %2004 = vst.msk [vmem:[#allocation11] sm:$0x1] %vm1931, %v2003
    // Predicated region
    $region22: #{tpu_custom_call.1} parent=1 // pred_check
      _
    $region23: #{tpu_custom_call.1} parent=1 // pred_check_branch
      %2006 = sbr.rel (0) target = $region25
    $region24: #{tpu_custom_call.1} parent=1 // pred_region
      %s2008 = ssub.s32 32, 32
      %2009 = vsyncadd [#allocation5], %s2008
      %s2011 = sshll.u32 [#allocation8], 4
      %s2012 = int_to_ptr.vmem [resolvable:$true] %s2011
      %2014 = dma.vmem_to_hbm [thread:$0]  %s2012, 32, %s2, [#allocation5]
    $region25: #{tpu_custom_call.1} parent=1 // pred_fallthru
      _
    // Predicated region
    $region26: #{tpu_custom_call.1} parent=1 // pred_check
      _
    $region27: #{tpu_custom_call.1} parent=1 // pred_check_branch
      %2016 = sbr.rel (0) target = $region29
    $region28: #{tpu_custom_call.1} parent=1 // pred_region
      %s2018 = ssub.s32 16, 16
      %2019 = vsyncadd [#allocation10], %s2018
      %s2021 = sshll.u32 [#allocation9], 4
      %s2022 = int_to_ptr.vmem [resolvable:$true] %s2021
      %2024 = dma.vmem_to_hbm [thread:$0]  %s2022, 16, %s3, [#allocation10]
    $region29: #{tpu_custom_call.1} parent=1 // pred_fallthru
      _
    // Predicated region
    $region30: #{tpu_custom_call.1} parent=1 // pred_check
      _
    $region31: #{tpu_custom_call.1} parent=1 // pred_check_branch
      %2026 = sbr.rel (0) target = $region33
    $region32: #{tpu_custom_call.1} parent=1 // pred_region
      %s2028 = ssub.s32 16, 16
      %2029 = vsyncadd [#allocation10], %s2028
      %s2031 = sshll.u32 [#allocation11], 4
      %s2032 = int_to_ptr.vmem [resolvable:$true] %s2031
      %2034 = dma.vmem_to_hbm [thread:$0]  %s2032, 16, %s4, [#allocation10]
    $region33: #{tpu_custom_call.1} parent=1 // pred_fallthru
      _
    // Predicated region
    $region34: #{tpu_custom_call.1} parent=1 // pred_check
      _
    $region35: #{tpu_custom_call.1} parent=1 // pred_check_branch
      %2036 = sbr.rel (0) target = $region37
    $region36: #{tpu_custom_call.1} parent=1 // pred_region
      %2037 = dma.done [#allocation5], 32
    $region37: #{tpu_custom_call.1} parent=1 // pred_fallthru
      _
    // Predicated region
    $region38: #{tpu_custom_call.1} parent=1 // pred_check
      _
    $region39: #{tpu_custom_call.1} parent=1 // pred_check_branch
      %2039 = sbr.rel (0) target = $region41
    $region40: #{tpu_custom_call.1} parent=1 // pred_region
      %2040 = dma.done [#allocation10], 16
    $region41: #{tpu_custom_call.1} parent=1 // pred_fallthru
      _
    // Predicated region
    $region42: #{tpu_custom_call.1} parent=1 // pred_check
      _
    $region43: #{tpu_custom_call.1} parent=1 // pred_check_branch
      %2042 = sbr.rel (0) target = $region45
    $region44: #{tpu_custom_call.1} parent=1 // pred_region
      %2043 = dma.done [#allocation10], 16
    $region45: #{tpu_custom_call.1} parent=1 // pred_fallthru
      _
    %2044 = vsyncpa [#allocation4], 1
    %2045 = vsyncpa [#allocation7], 1
    %2046 = vsyncpa [#allocation5], 1
    %2047 = vsyncpa [#allocation10], 1

</llo_original>
